<compile_context>
chip_gen: v6e
topology: v6e:2x2x1
jax: 0.10.0
libtpu: 0.0.40
codegen_flags: <defaults>
</compile_context>

<pallas_src>
import functools

import jax
import jax.numpy as jnp
from jax.experimental import pallas as pl
from jax.experimental.pallas import tpu as pltpu

IN_DIM = 31
HID_DIM = 64
OUT_DIM = 3


def color_net_kernel(x_ref, w1_ref, w2_ref, w3_ref, o_ref):
    # x_ref : (tm, IN_DIM)        activation tile (f32 in HBM, cast here)
    # w1_ref: (IN_DIM, HID_DIM)   pre-transposed weights (compute dtype, VMEM-resident)
    # w2_ref: (HID_DIM, HID_DIM)
    # w3_ref: (HID_DIM, OUT_DIM)
    # o_ref : (tm, OUT_DIM)       f32 output tile
    cdt = w1_ref.dtype
    x = x_ref[...].astype(cdt)                                         # in-kernel cast
    h = jnp.dot(x, w1_ref[...], preferred_element_type=jnp.float32)    # (tm, 64)
    h = jnp.maximum(h, 0.0).astype(cdt)                                # ReLU
    h = jnp.dot(h, w2_ref[...], preferred_element_type=jnp.float32)    # (tm, 64)
    h = jnp.maximum(h, 0.0).astype(cdt)                                # ReLU
    y = jnp.dot(h, w3_ref[...], preferred_element_type=jnp.float32)    # (tm, 3)
    o_ref[...] = jax.nn.sigmoid(y).astype(o_ref.dtype)                 # sigmoid (EUP)


def _round_up(a, b):
    return pl.cdiv(a, b) * b


@functools.partial(jax.jit, static_argnames=("tm", "compute_dtype"))
def color_net_forward(x, w1, w2, w3, *, tm=1024, compute_dtype=jnp.bfloat16):
    """x: (..., 31); w1: (64, 31); w2: (64, 64); w3: (3, 64)  (torch (out, in) layout).

    Returns sigmoid(relu(relu(x @ w1.T) @ w2.T) @ w3.T) with shape (..., 3).
    """
    lead_shape = x.shape[:-1]
    assert x.shape[-1] == IN_DIM
    x2 = x.reshape(-1, IN_DIM)
    N = x2.shape[0]

    # Row tile: multiple of 256 (sublane friendly), clamped near the batch size.
    tm = max(256, min(_round_up(tm, 256), _round_up(N, 256)))
    grid = (pl.cdiv(N, tm),)   # ragged last block handled by Pallas edge masking

    # Tiny weights: pre-transpose + cast once on the XLA side (~25 KB total).
    w1t = w1.T.astype(compute_dtype)   # (31, 64)
    w2t = w2.T.astype(compute_dtype)   # (64, 64)
    w3t = w3.T.astype(compute_dtype)   # (64, 3)

    itemsize = jnp.dtype(compute_dtype).itemsize
    n_w = IN_DIM * HID_DIM + HID_DIM * HID_DIM + HID_DIM * OUT_DIM
    cost = pl.CostEstimate(
        flops=2 * N * n_w,
        transcendentals=N * OUT_DIM,
        bytes_accessed=N * IN_DIM * x2.dtype.itemsize
        + N * OUT_DIM * 4
        + n_w * itemsize,
    )

    out = pl.pallas_call(
        color_net_kernel,
        out_shape=jax.ShapeDtypeStruct((N, OUT_DIM), jnp.float32),
        grid_spec=pltpu.PrefetchScalarGridSpec(
            num_scalar_prefetch=0,
            grid=grid,
            in_specs=[
                pl.BlockSpec((tm, IN_DIM), lambda i: (i, 0)),          # x row tile
                pl.BlockSpec(memory_space=pltpu.MemorySpace.VMEM),     # w1^T resident
                pl.BlockSpec(memory_space=pltpu.MemorySpace.VMEM),     # w2^T resident
                pl.BlockSpec(memory_space=pltpu.MemorySpace.VMEM),     # w3^T resident
            ],
            out_specs=pl.BlockSpec((tm, OUT_DIM), lambda i: (i, 0)),
        ),
        compiler_params=pltpu.CompilerParams(
            dimension_semantics=("parallel",),
        ),
        cost_estimate=cost,
    )(x2, w1t, w2t, w3t)

    return out.astype(x.dtype).reshape(*lead_shape, OUT_DIM)


def reference_forward(x, w1, w2, w3):
    h = jnp.maximum(x @ w1.T, 0.0)
    h = jnp.maximum(h @ w2.T, 0.0)
    return jax.nn.sigmoid(h @ w3.T)


if __name__ == "__main__":
    key = jax.random.PRNGKey(0)
    k_x, k_w1, k_w2, k_w3 = jax.random.split(key, 4)

    # Deterministic synthetic parameters in torch nn.Linear layout (out, in),
    # Kaiming-uniform-ish scale: U(-1/sqrt(fan_in), 1/sqrt(fan_in)).
    def init_w(k, fan_out, fan_in):
        bound = 1.0 / jnp.sqrt(jnp.float32(fan_in))
        return jax.random.uniform(
            k, (fan_out, fan_in), dtype=jnp.float32, minval=-bound, maxval=bound
        )

    w1 = init_w(k_w1, HID_DIM, IN_DIM)    # linear1: 31 -> 64
    w2 = init_w(k_w2, HID_DIM, HID_DIM)   # linear2: 64 -> 64
    w3 = init_w(k_w3, OUT_DIM, HID_DIM)   # linear3: 64 -> 3

    # Small demo batch; ragged on purpose (exercises edge-block masking + multi-step grid).
    N = 1000
    x = jax.random.normal(k_x, (N, IN_DIM), dtype=jnp.float32)

    out = color_net_forward(x, w1, w2, w3, tm=256)
    out = jax.block_until_ready(out)

    ref = reference_forward(x, w1, w2, w3)
    assert out.shape == (N, OUT_DIM)
    max_err = float(jnp.max(jnp.abs(out - ref)))
    # bf16 matmul inputs with f32 accumulation: loose tolerance vs. f32 reference.
    assert max_err < 3e-2, f"mismatch vs. JAX reference: max abs err {max_err}"

    print("KERNEL_OK")
</pallas_src>

<mosaic_0001>
module attributes {stable_mosaic.version = 11 : i64} {
  func.func @color_net_kernel(%arg0: i32, %arg1: memref<256x31xf32, #tpu.memory_space<vmem>>, %arg2: memref<31x64xbf16, #tpu.memory_space<vmem>>, %arg3: memref<64x64xbf16, #tpu.memory_space<vmem>>, %arg4: memref<64x3xbf16, #tpu.memory_space<vmem>>, %arg5: memref<256x3xf32, #tpu.memory_space<vmem>>) attributes {dimension_semantics = [#tpu.dimension_semantics<parallel>], iteration_bounds = array<i64: 4>, scalar_prefetch = 0 : i64, scratch_operands = 0 : i64, tpu.core_type = #tpu.core_type<tc>, window_params = [{transform_indices = @transform_0, window_bounds = array<i64: 256, 31>}, {pipeline_mode = #tpu.pipeline_mode<synchronous>, transform_indices = @transform_1, window_bounds = array<i64: 31, 64>}, {pipeline_mode = #tpu.pipeline_mode<synchronous>, transform_indices = @transform_2, window_bounds = array<i64: 64, 64>}, {pipeline_mode = #tpu.pipeline_mode<synchronous>, transform_indices = @transform_3, window_bounds = array<i64: 64, 3>}, {transform_indices = @transform_4, window_bounds = array<i64: 256, 3>}]} {
    %c0 = arith.constant 0 : index
    %c0_0 = arith.constant 0 : index
    %0 = vector.load %arg1[%c0, %c0_0] : memref<256x31xf32, #tpu.memory_space<vmem>>, vector<256x31xf32>
    %1 = arith.truncf %0 : vector<256x31xf32> to vector<256x31xbf16>
    %c0_1 = arith.constant 0 : index
    %c0_2 = arith.constant 0 : index
    %2 = vector.load %arg2[%c0_1, %c0_2] : memref<31x64xbf16, #tpu.memory_space<vmem>>, vector<31x64xbf16>
    %cst = arith.constant dense<0.000000e+00> : vector<256x64xf32>
    %3 = tpu.matmul %1, %2, %cst {dimension_numbers = #tpu.dot_dimension_numbers<[1], [0], [0], [1], [0, 0, 1, 1], [], []>} : vector<256x31xbf16>, vector<31x64xbf16>, vector<256x64xf32> -> vector<256x64xf32>
    %cst_3 = arith.constant 0.000000e+00 : f32
    %4 = vector.broadcast %cst_3 : f32 to vector<256x64xf32>
    %5 = arith.maximumf %3, %4 : vector<256x64xf32>
    %6 = arith.truncf %5 : vector<256x64xf32> to vector<256x64xbf16>
    %c0_4 = arith.constant 0 : index
    %c0_5 = arith.constant 0 : index
    %7 = vector.load %arg3[%c0_4, %c0_5] : memref<64x64xbf16, #tpu.memory_space<vmem>>, vector<64x64xbf16>
    %cst_6 = arith.constant dense<0.000000e+00> : vector<256x64xf32>
    %8 = tpu.matmul %6, %7, %cst_6 {dimension_numbers = #tpu.dot_dimension_numbers<[1], [0], [0], [1], [0, 0, 1, 1], [], []>} : vector<256x64xbf16>, vector<64x64xbf16>, vector<256x64xf32> -> vector<256x64xf32>
    %cst_7 = arith.constant 0.000000e+00 : f32
    %9 = vector.broadcast %cst_7 : f32 to vector<256x64xf32>
    %10 = arith.maximumf %8, %9 : vector<256x64xf32>
    %11 = arith.truncf %10 : vector<256x64xf32> to vector<256x64xbf16>
    %c0_8 = arith.constant 0 : index
    %c0_9 = arith.constant 0 : index
    %12 = vector.load %arg4[%c0_8, %c0_9] : memref<64x3xbf16, #tpu.memory_space<vmem>>, vector<64x3xbf16>
    %cst_10 = arith.constant dense<0.000000e+00> : vector<256x3xf32>
    %13 = tpu.matmul %11, %12, %cst_10 {dimension_numbers = #tpu.dot_dimension_numbers<[1], [0], [0], [1], [0, 0, 1, 1], [], []>} : vector<256x64xbf16>, vector<64x3xbf16>, vector<256x3xf32> -> vector<256x3xf32>
    %14 = arith.negf %13 : vector<256x3xf32>
    %15 = math.exp %14 : vector<256x3xf32>
    %cst_11 = arith.constant 1.000000e+00 : f32
    %16 = vector.broadcast %cst_11 : f32 to vector<256x3xf32>
    %17 = arith.addf %16, %15 : vector<256x3xf32>
    %18 = arith.divf %16, %17 : vector<256x3xf32>
    %c0_12 = arith.constant 0 : index
    %c0_13 = arith.constant 0 : index
    %19 = vector.load %arg5[%c0_12, %c0_13] : memref<256x3xf32, #tpu.memory_space<vmem>>, vector<256x3xf32>
    tpu.vector_store %arg5[%c0_12, %c0_13], %18 {strides = array<i32>} : memref<256x3xf32, #tpu.memory_space<vmem>>, vector<256x3xf32>,
    return
  }
  func.func @transform_0(%arg0: i32) -> (i32, i32) {
    %c0_i32 = arith.constant 0 : i32
    %c0_i32_0 = arith.constant 0 : i32
    return %arg0, %c0_i32 : i32, i32
  }
  func.func @transform_1(%arg0: i32) -> (i32, i32) {
    %c0_i32 = arith.constant 0 : i32
    %c0_i32_0 = arith.constant 0 : i32
    %c0_i32_1 = arith.constant 0 : i32
    return %c0_i32, %c0_i32_0 : i32, i32
  }
  func.func @transform_2(%arg0: i32) -> (i32, i32) {
    %c0_i32 = arith.constant 0 : i32
    %c0_i32_0 = arith.constant 0 : i32
    %c0_i32_1 = arith.constant 0 : i32
    return %c0_i32, %c0_i32_0 : i32, i32
  }
  func.func @transform_3(%arg0: i32) -> (i32, i32) {
    %c0_i32 = arith.constant 0 : i32
    %c0_i32_0 = arith.constant 0 : i32
    %c0_i32_1 = arith.constant 0 : i32
    return %c0_i32, %c0_i32_0 : i32, i32
  }
  func.func @transform_4(%arg0: i32) -> (i32, i32) {
    %c0_i32 = arith.constant 0 : i32
    %c0_i32_0 = arith.constant 0 : i32
    return %arg0, %c0_i32 : i32, i32
  }
}

</mosaic_0001>

<llo_original>
// kernel: color_net_forward.1
$region0: #{color_net_forward.1}
  #allocation0 [shape = 'u32[]', space=smem, size = 0x4, offset = 0x4, fixed_abs, tag = 'smem constant byte address 0x4 - core index']
  #allocation1 [shape = 'u32[144,128]{1,0:T(1,128)}', space=vmem, size = 0x12000, scoped, tag = 'internal scratch']
  %s0 = inlined_call_operand.vmem [shape: f32[1000,31], index: 0, kind: input, shape index: {}]
  %s1 = inlined_call_operand.vmem [shape: bf16[31,64], index: 1, kind: input, shape index: {}]
  %s2 = inlined_call_operand.vmem [shape: bf16[64,64], index: 2, kind: input, shape index: {}]
  %s3 = inlined_call_operand.vmem [shape: bf16[64,3], index: 3, kind: input, shape index: {}]
  %s4 = inlined_call_operand.vmem [shape: f32[1000,3], index: 4, kind: output, shape index: {}]
  %s5 = sld [smem:[#allocation0]]
  $region97: #{color_net_forward.1} parent=0
    _
  %s7 = ssub.s32 1, %s5
  %s8 = scalar_select 0, %s7, %s5
  $region1: #{color_net_forward.1} parent=0
    #allocation2 [shape = 'u8[262144]{0}', space=vmem, size = 0x40000, scoped, tag = 'output window, operand 0']
    loop: start=0, step=1, limit=6
    $region2: #{color_net_forward.1} parent=1 // loop_pre_header
      _
    $region3: #{color_net_forward.1} parent=1 // loop_header
      %s10 = sphi 0, %s14
      %p11 = scmp.ge.s32.totalorder %s10, 6
      %s20 = sphi 0, %s22
      %s23 = sphi 0, %s20
      %s24 = sphi 0, %s23
      %s40 = sphi 0, %s24
      %s44 = sphi 0, %s44
      %s46 = sphi 0, %s44
      %s47 = sphi 0, %s46
      %s61 = sphi 0, %s47
      %s65 = sphi 0, %s65
      %s67 = sphi 0, %s65
      %s68 = sphi 0, %s67
      %s82 = sphi 0, %s68
      %s86 = sphi 0, %s86
      %s88 = sphi 0, %s86
      %s89 = sphi 0, %s88
      %s103 = sphi 0, %s89
      %s109 = sphi 0, %s111
      %s112 = sphi 0, %s109
      %s113 = sphi 0, %s112
      %s129 = sphi 0, %s113
    $region4: #{color_net_forward.1} parent=1 // loop_header_branch
      %13 = sbr.rel (%p11) target = $region8
    $region5: #{color_net_forward.1} parent=1 // loop_body
      %s15 = ssub.s32 %s10, 1
      %s16 = ssub.s32 %s10, 2
      %s17 = sadd.s32 %s10, 1
      %s18 = ssub.s32 %s10, %s17
      %p19 = scmp.eq.s32.totalorder %s18, 0
      %s21 = sadd.s32 %s20, 1
      %s22 = scalar_select %p19, %s20, %s21
      %p25 = pneg %p19
      %p26 = scmp.eq.s32.totalorder %s10, 3
      %p27 = por %p25, %p26
      %p28 = scmp.ne.s32.totalorder %s20, %s23
      %p29 = scmp.eq.s32.totalorder %s10, 0
      %p30 = por %p28, %p29
      %p31 = scmp.ne.s32.totalorder %s20, %s23
      %p32 = scmp.eq.s32.totalorder %s15, 3
      %p33 = por %p31, %p32
      %p34 = scmp.ne.s32.totalorder %s23, %s24
      %p35 = scmp.eq.s32.totalorder %s15, 0
      %p36 = por %p34, %p35
      %p37 = scmp.ne.s32.totalorder %s23, %s24
      %p38 = scmp.eq.s32.totalorder %s16, 3
      %p39 = por %p37, %p38
      %p41 = scmp.ne.s32.totalorder %s24, %s40
      %p42 = scmp.eq.s32.totalorder %s16, 0
      %p43 = por %p41, %p42
      %s45 = sadd.s32 %s44, 1
      %p48 = scmp.eq.s32.totalorder %s10, 3
      %p49 = scmp.ne.s32.totalorder %s44, %s46
      %p50 = scmp.eq.s32.totalorder %s10, 0
      %p51 = por %p49, %p50
      %p52 = scmp.ne.s32.totalorder %s44, %s46
      %p53 = scmp.eq.s32.totalorder %s15, 3
      %p54 = por %p52, %p53
      %p55 = scmp.ne.s32.totalorder %s46, %s47
      %p56 = scmp.eq.s32.totalorder %s15, 0
      %p57 = por %p55, %p56
      %p58 = scmp.ne.s32.totalorder %s46, %s47
      %p59 = scmp.eq.s32.totalorder %s16, 3
      %p60 = por %p58, %p59
      %p62 = scmp.ne.s32.totalorder %s47, %s61
      %p63 = scmp.eq.s32.totalorder %s16, 0
      %p64 = por %p62, %p63
      %s66 = sadd.s32 %s65, 1
      %p69 = scmp.eq.s32.totalorder %s10, 3
      %p70 = scmp.ne.s32.totalorder %s65, %s67
      %p71 = scmp.eq.s32.totalorder %s10, 0
      %p72 = por %p70, %p71
      %p73 = scmp.ne.s32.totalorder %s65, %s67
      %p74 = scmp.eq.s32.totalorder %s15, 3
      %p75 = por %p73, %p74
      %p76 = scmp.ne.s32.totalorder %s67, %s68
      %p77 = scmp.eq.s32.totalorder %s15, 0
      %p78 = por %p76, %p77
      %p79 = scmp.ne.s32.totalorder %s67, %s68
      %p80 = scmp.eq.s32.totalorder %s16, 3
      %p81 = por %p79, %p80
      %p83 = scmp.ne.s32.totalorder %s68, %s82
      %p84 = scmp.eq.s32.totalorder %s16, 0
      %p85 = por %p83, %p84
      %s87 = sadd.s32 %s86, 1
      %p90 = scmp.eq.s32.totalorder %s10, 3
      %p91 = scmp.ne.s32.totalorder %s86, %s88
      %p92 = scmp.eq.s32.totalorder %s10, 0
      %p93 = por %p91, %p92
      %p94 = scmp.ne.s32.totalorder %s86, %s88
      %p95 = scmp.eq.s32.totalorder %s15, 3
      %p96 = por %p94, %p95
      %p97 = scmp.ne.s32.totalorder %s88, %s89
      %p98 = scmp.eq.s32.totalorder %s15, 0
      %p99 = por %p97, %p98
      %p100 = scmp.ne.s32.totalorder %s88, %s89
      %p101 = scmp.eq.s32.totalorder %s16, 3
      %p102 = por %p100, %p101
      %p104 = scmp.ne.s32.totalorder %s89, %s103
      %p105 = scmp.eq.s32.totalorder %s16, 0
      %p106 = por %p104, %p105
      %s107 = ssub.s32 %s10, %s17
      %p108 = scmp.eq.s32.totalorder %s107, 0
      %s110 = sadd.s32 %s109, 1
      %s111 = scalar_select %p108, %s109, %s110
      %p114 = pneg %p108
      %p115 = scmp.eq.s32.totalorder %s10, 3
      %p116 = por %p114, %p115
      %p117 = scmp.ne.s32.totalorder %s109, %s112
      %p118 = scmp.eq.s32.totalorder %s10, 0
      %p119 = por %p117, %p118
      %p120 = scmp.ne.s32.totalorder %s109, %s112
      %p121 = scmp.eq.s32.totalorder %s15, 3
      %p122 = por %p120, %p121
      %p123 = scmp.ne.s32.totalorder %s112, %s113
      %p124 = scmp.eq.s32.totalorder %s15, 0
      %p125 = por %p123, %p124
      %p126 = scmp.ne.s32.totalorder %s112, %s113
      %p127 = scmp.eq.s32.totalorder %s16, 3
      %p128 = por %p126, %p127
      %p130 = scmp.ne.s32.totalorder %s113, %s129
      %p131 = scmp.eq.s32.totalorder %s16, 0
      %p132 = por %p130, %p131
      %p133 = scmp.le.s32.totalorder 1, %s10
      %p134 = scmp.lt.s32.totalorder %s10, 5
      %p135 = pnand %p133, %p134
      %p136 = pneg %p135
      // Predicated region
      $region9: #{color_net_forward.1} parent=5 // pred_check
        _
      $region10: #{color_net_forward.1} parent=5 // pred_check_branch
        %138 = sbr.rel (%p135) target = $region12
      $region11: #{color_net_forward.1} parent=5 // pred_region
        %s139 = ssub.s32 %s10, 1
        // Predicated region
        $region13: #{color_net_forward.1} parent=11 // pred_check
          %p140 = pneg %p57
        $region14: #{color_net_forward.1} parent=11 // pred_check_branch
          %142 = sbr.rel (%p140) target = $region16
        $region15: #{color_net_forward.1} parent=11 // pred_region
          _
        $region16: #{color_net_forward.1} parent=11 // pred_fallthru
          _
        // Predicated region
        $region17: #{color_net_forward.1} parent=11 // pred_check
          %p143 = pneg %p78
        $region18: #{color_net_forward.1} parent=11 // pred_check_branch
          %145 = sbr.rel (%p143) target = $region20
        $region19: #{color_net_forward.1} parent=11 // pred_region
          _
        $region20: #{color_net_forward.1} parent=11 // pred_fallthru
          _
        // Predicated region
        $region21: #{color_net_forward.1} parent=11 // pred_check
          %p146 = pneg %p99
        $region22: #{color_net_forward.1} parent=11 // pred_check_branch
          %148 = sbr.rel (%p146) target = $region24
        $region23: #{color_net_forward.1} parent=11 // pred_region
          _
        $region24: #{color_net_forward.1} parent=11 // pred_fallthru
          _
      $region12: #{color_net_forward.1} parent=5 // pred_fallthru
        _
      %p149 = scmp.lt.s32.totalorder %s10, 4
      // Predicated region
      $region25: #{color_net_forward.1} parent=5 // pred_check
        %p150 = pneg %p149
      $region26: #{color_net_forward.1} parent=5 // pred_check_branch
        %152 = sbr.rel (%p150) target = $region28
      $region27: #{color_net_forward.1} parent=5 // pred_region
        // Predicated region
        $region29: #{color_net_forward.1} parent=27 // pred_check
          %p153 = pneg %p30
        $region30: #{color_net_forward.1} parent=27 // pred_check_branch
          %155 = sbr.rel (%p153) target = $region32
        $region31: #{color_net_forward.1} parent=27 // pred_region
          %s156 = smul.u32 32, %s10
          %s157 = ssub.s32 125, %s156
          %p158 = scmp.lt.s32.totalorder %s157, 32
          %s159 = scalar_select %p158, %s157, 32
          %s160 = smul.u32 128, %s159
          %p161 = scmp.lt.s32.totalorder %s156, 124
          %s162 = scalar_select %p161, %s156, 124
          %s163 = smul.addr %s162, 8
          %s164 = scalar_lea.vmem %s0, %s163
          %s165 = smul.u32 32, %s10
          %s166 = ssub.s32 125, %s165
          %p167 = scmp.lt.s32.totalorder %s166, 32
          %s168 = scalar_select %p167, %s166, 32
          %s169 = smul.u32 128, %s168
        $region32: #{color_net_forward.1} parent=27 // pred_fallthru
          _
      $region28: #{color_net_forward.1} parent=5 // pred_fallthru
        _
      %p170 = scmp.le.s32.totalorder 1, %s10
      %p171 = scmp.lt.s32.totalorder %s10, 5
      %p172 = pnand %p170, %p171
      %p173 = pneg %p172
      // Predicated region
      $region33: #{color_net_forward.1} parent=5 // pred_check
        _
      $region34: #{color_net_forward.1} parent=5 // pred_check_branch
        %175 = sbr.rel (%p172) target = $region36
      $region35: #{color_net_forward.1} parent=5 // pred_region
        %s176 = ssub.s32 %s10, 1
        %s177 = smul.u32 32, %s15
        %s178 = ssub.s32 125, %s177
        %p179 = scmp.lt.s32.totalorder %s178, 32
        %s180 = scalar_select %p179, %s178, 32
        %s181 = smul.u32 128, %s180
        %p182 = scmp.lt.s32.totalorder %s177, 124
        %s183 = scalar_select %p182, %s177, 124
        %s184 = smul.addr %s183, 8
        %s185 = scalar_lea.vmem %s0, %s184
        %p186 = pneg %p36
        %p187 = pneg %p33
        %p188 = pneg %p57
        %p189 = pneg %p54
        %p190 = pneg %p78
        %p191 = pneg %p75
        %p192 = pneg %p99
        %p193 = pneg %p96
        %p194 = pneg %p125
        %p195 = pneg %p122
        %s196 = sand.u32 %s112, 1
        %s197 = sand.u32 %s112, 1
        %s198 = smul.addr %s197, 256
        %s199 = scalar_lea.vmem [#allocation2], %s198
        %s200 = smul.u32 32, %s15
        %s201 = ssub.s32 125, %s200
        %p202 = scmp.lt.s32.totalorder %s201, 32
        %s203 = scalar_select %p202, %s201, 32
        %s204 = smul.u32 128, %s203
        %p205 = scmp.lt.s32.totalorder %s200, 124
        %s206 = scalar_select %p205, %s200, 124
        %s207 = smul.addr %s206, 8
        %s208 = scalar_lea.vmem %s0, %s207
        %s209 = smul.u32 32, %s15
        %s210 = ssub.s32 125, %s209
        %p211 = scmp.lt.s32.totalorder %s210, 32
        %s212 = scalar_select %p211, %s210, 32
        %s213 = smul.u32 128, %s212
        %s214 = smul.u32 32, %s15
        %s215 = ssub.s32 125, %s214
        %p216 = scmp.lt.s32.totalorder %s215, 32
        %s217 = scalar_select %p216, %s215, 32
        %s218 = smul.u32 128, %s217
        %v220 = vld [vmem:[%s208] sm:$0xff]
        %v221 = vld [vmem:[%s208 + $0x8] sm:$0xff]
        %v222 = vld [vmem:[%s208 + $0x10] sm:$0xff]
        %v223 = vld [vmem:[%s208 + $0x18] sm:$0xff]
        %v224 = vld [vmem:[%s208 + $0x20] sm:$0xff]
        %v225 = vld [vmem:[%s208 + $0x28] sm:$0xff]
        %v226 = vld [vmem:[%s208 + $0x30] sm:$0xff]
        %v227 = vld [vmem:[%s208 + $0x38] sm:$0xff]
        %v228 = vld [vmem:[%s208 + $0x40] sm:$0xff]
        %v229 = vld [vmem:[%s208 + $0x48] sm:$0xff]
        %v230 = vld [vmem:[%s208 + $0x50] sm:$0xff]
        %v231 = vld [vmem:[%s208 + $0x58] sm:$0xff]
        %v232 = vld [vmem:[%s208 + $0x60] sm:$0xff]
        %v233 = vld [vmem:[%s208 + $0x68] sm:$0xff]
        %v234 = vld [vmem:[%s208 + $0x70] sm:$0xff]
        %v235 = vld [vmem:[%s208 + $0x78] sm:$0xff]
        %v236 = vld [vmem:[%s208 + $0x80] sm:$0xff]
        %v237 = vld [vmem:[%s208 + $0x88] sm:$0xff]
        %v238 = vld [vmem:[%s208 + $0x90] sm:$0xff]
        %v239 = vld [vmem:[%s208 + $0x98] sm:$0xff]
        %v240 = vld [vmem:[%s208 + $0xa0] sm:$0xff]
        %v241 = vld [vmem:[%s208 + $0xa8] sm:$0xff]
        %v242 = vld [vmem:[%s208 + $0xb0] sm:$0xff]
        %v243 = vld [vmem:[%s208 + $0xb8] sm:$0xff]
        %v244 = vld [vmem:[%s208 + $0xc0] sm:$0xff]
        %v245 = vld [vmem:[%s208 + $0xc8] sm:$0xff]
        %v246 = vld [vmem:[%s208 + $0xd0] sm:$0xff]
        %v247 = vld [vmem:[%s208 + $0xd8] sm:$0xff]
        %v248 = vld [vmem:[%s208 + $0xe0] sm:$0xff]
        %v249 = vld [vmem:[%s208 + $0xe8] sm:$0xff]
        %v250 = vld [vmem:[%s208 + $0xf0] sm:$0xff]
        %v251 = vld [vmem:[%s208 + $0xf8] sm:$0xff]
        %v252 = vpack.c.bf16 %v221, %v220
        %v253 = vpack.c.bf16 %v223, %v222
        %v254 = vpack.c.bf16 %v225, %v224
        %v255 = vpack.c.bf16 %v227, %v226
        %v256 = vpack.c.bf16 %v229, %v228
        %v257 = vpack.c.bf16 %v231, %v230
        %v258 = vpack.c.bf16 %v233, %v232
        %v259 = vpack.c.bf16 %v235, %v234
        %v260 = vpack.c.bf16 %v237, %v236
        %v261 = vpack.c.bf16 %v239, %v238
        %v262 = vpack.c.bf16 %v241, %v240
        %v263 = vpack.c.bf16 %v243, %v242
        %v264 = vpack.c.bf16 %v245, %v244
        %v265 = vpack.c.bf16 %v247, %v246
        %v266 = vpack.c.bf16 %v249, %v248
        %v267 = vpack.c.bf16 %v251, %v250
        %v268 = vld [vmem:[%s1] sm:$0xf]
        %v269 = vld [vmem:[%s1 + $0x4] sm:$0xf]
        %v270 = vld [vmem:[%s1 + $0x8] sm:$0xf]
        %v271 = vld [vmem:[%s1 + $0xc] sm:$0xf]
        %v276 = vunpack.c.l.b16 %v268
        %v277 = vunpack.c.l.b16 %v269
        %v278 = vunpack.c.l.b16 %v270
        %v279 = vunpack.c.l.b16 %v271
        %v280 = vpack.c.b16 %v277, %v276
        %v281 = vpack.c.b16 %v279, %v278
        %vm283 = vcmask 252928
        %v285 = vsel %vm283, %v252, 0
        %v288 = vsel %vm283, %v253, 0
        %v291 = vsel %vm283, %v254, 0
        %v294 = vsel %vm283, %v255, 0
        %v297 = vsel %vm283, %v256, 0
        %v300 = vsel %vm283, %v257, 0
        %v303 = vsel %vm283, %v258, 0
        %v306 = vsel %vm283, %v259, 0
        %v309 = vsel %vm283, %v260, 0
        %v312 = vsel %vm283, %v261, 0
        %v315 = vsel %vm283, %v262, 0
        %v318 = vsel %vm283, %v263, 0
        %v321 = vsel %vm283, %v264, 0
        %v324 = vsel %vm283, %v265, 0
        %v327 = vsel %vm283, %v266, 0
        %v330 = vsel %vm283, %v267, 0
        %vm332 = vcmask 1046528
        %vm333 = vcmask 1047552
        %v334 = vsel %vm332, 4294967295, 65535
        %v335 = vsel %vm333, %v334, 0
        %v337 = vand.u32 %v281, %v335
        %339 = vmatprep.subr.bf16.mxu0 0
        %340 = vmatpush1.bf16.msra.mxu0 0
        %341 = vmatprep.subr.bf16.mxu0 0
        %342 = vmatpush1.bf16.msra.mxu0 0
        %343 = vmatprep.subr.bf16.mxu0 0
        %344 = vmatpush1.bf16.msra.mxu0 0
        %345 = vmatprep.subr.bf16.mxu0 0
        %346 = vmatpush1.bf16.msra.mxu0 0
        %347 = vmatprep.subr.bf16.mxu0 0
        %348 = vmatpush1.bf16.msra.mxu0 0
        %349 = vmatprep.subr.bf16.mxu0 0
        %350 = vmatpush1.bf16.msra.mxu0 0
        %351 = vmatprep.subr.bf16.mxu0 0
        %352 = vmatpush1.bf16.msra.mxu0 %v337
        %353 = vmatprep.subr.bf16.mxu0 0
        %354 = vmatpush1.bf16.msra.mxu0 %v280
        %355 = vmatprep.subr.bf16.mxu0 0
        %356 = vmatpush2.bf16.msra.mxu0 0
        %357 = vmatprep.subr.bf16.mxu0 0
        %358 = vmatpush2.bf16.msra.mxu0 0
        %359 = vmatprep.subr.bf16.mxu0 0
        %360 = vmatpush2.bf16.msra.mxu0 0
        %361 = vmatprep.subr.bf16.mxu0 0
        %362 = vmatpush2.bf16.msra.mxu0 0
        %363 = vmatprep.subr.bf16.mxu0 0
        %364 = vmatpush2.bf16.msra.mxu0 0
        %365 = vmatprep.subr.bf16.mxu0 0
        %366 = vmatpush2.bf16.msra.mxu0 0
        %367 = vmatprep.subr.bf16.mxu0 0
        %368 = vmatpush2.bf16.msra.mxu0 0
        %369 = vmatprep.subr.bf16.mxu0 0
        %370 = vmatpush2.bf16.msra.mxu0 0
        %371 = vmatprep.mubr.bf16.mxu0 0
        %372 = vmatmul.mubr.bf16.gmra.mxu0 %v285
        %v373 = vpop.f32.mrf.mxu0
        %v374 = vadd.f32 0.0, %v373
        %v375 = vpop.f32.mrf.mxu0
        %v376 = vpop.f32.mrf.mxu0
        %v377 = vadd.f32 0.0, %v376
        %v378 = vpop.f32.mrf.mxu0
        %379 = vmatprep.mubr.bf16.mxu0 0
        %380 = vmatmul.mubr.bf16.gmra.mxu0 %v288
        %v381 = vpop.f32.mrf.mxu0
        %v382 = vadd.f32 0.0, %v381
        %v383 = vpop.f32.mrf.mxu0
        %v384 = vpop.f32.mrf.mxu0
        %v385 = vadd.f32 0.0, %v384
        %v386 = vpop.f32.mrf.mxu0
        %387 = vmatprep.mubr.bf16.mxu0 0
        %388 = vmatmul.mubr.bf16.gmra.mxu0 %v291
        %v389 = vpop.f32.mrf.mxu0
        %v390 = vadd.f32 0.0, %v389
        %v391 = vpop.f32.mrf.mxu0
        %v392 = vpop.f32.mrf.mxu0
        %v393 = vadd.f32 0.0, %v392
        %v394 = vpop.f32.mrf.mxu0
        %395 = vmatprep.mubr.bf16.mxu0 0
        %396 = vmatmul.mubr.bf16.gmra.mxu0 %v294
        %v397 = vpop.f32.mrf.mxu0
        %v398 = vadd.f32 0.0, %v397
        %v399 = vpop.f32.mrf.mxu0
        %v400 = vpop.f32.mrf.mxu0
        %v401 = vadd.f32 0.0, %v400
        %v402 = vpop.f32.mrf.mxu0
        %403 = vmatprep.mubr.bf16.mxu0 0
        %404 = vmatmul.mubr.bf16.gmra.mxu0 %v297
        %v405 = vpop.f32.mrf.mxu0
        %v406 = vadd.f32 0.0, %v405
        %v407 = vpop.f32.mrf.mxu0
        %v408 = vpop.f32.mrf.mxu0
        %v409 = vadd.f32 0.0, %v408
        %v410 = vpop.f32.mrf.mxu0
        %411 = vmatprep.mubr.bf16.mxu0 0
        %412 = vmatmul.mubr.bf16.gmra.mxu0 %v300
        %v413 = vpop.f32.mrf.mxu0
        %v414 = vadd.f32 0.0, %v413
        %v415 = vpop.f32.mrf.mxu0
        %v416 = vpop.f32.mrf.mxu0
        %v417 = vadd.f32 0.0, %v416
        %v418 = vpop.f32.mrf.mxu0
        %419 = vmatprep.mubr.bf16.mxu0 0
        %420 = vmatmul.mubr.bf16.gmra.mxu0 %v303
        %v421 = vpop.f32.mrf.mxu0
        %v422 = vadd.f32 0.0, %v421
        %v423 = vpop.f32.mrf.mxu0
        %v424 = vpop.f32.mrf.mxu0
        %v425 = vadd.f32 0.0, %v424
        %v426 = vpop.f32.mrf.mxu0
        %427 = vmatprep.mubr.bf16.mxu0 0
        %428 = vmatmul.mubr.bf16.gmra.mxu0 %v306
        %v429 = vpop.f32.mrf.mxu0
        %v430 = vadd.f32 0.0, %v429
        %v431 = vpop.f32.mrf.mxu0
        %v432 = vpop.f32.mrf.mxu0
        %v433 = vadd.f32 0.0, %v432
        %v434 = vpop.f32.mrf.mxu0
        %435 = vmatprep.mubr.bf16.mxu0 0
        %436 = vmatmul.mubr.bf16.gmra.mxu0 %v309
        %v437 = vpop.f32.mrf.mxu0
        %v438 = vadd.f32 0.0, %v437
        %v439 = vpop.f32.mrf.mxu0
        %v440 = vpop.f32.mrf.mxu0
        %v441 = vadd.f32 0.0, %v440
        %v442 = vpop.f32.mrf.mxu0
        %443 = vmatprep.mubr.bf16.mxu0 0
        %444 = vmatmul.mubr.bf16.gmra.mxu0 %v312
        %v445 = vpop.f32.mrf.mxu0
        %v446 = vadd.f32 0.0, %v445
        %v447 = vpop.f32.mrf.mxu0
        %v448 = vpop.f32.mrf.mxu0
        %v449 = vadd.f32 0.0, %v448
        %v450 = vpop.f32.mrf.mxu0
        %451 = vmatprep.mubr.bf16.mxu0 0
        %452 = vmatmul.mubr.bf16.gmra.mxu0 %v315
        %v453 = vpop.f32.mrf.mxu0
        %v454 = vadd.f32 0.0, %v453
        %v455 = vpop.f32.mrf.mxu0
        %v456 = vpop.f32.mrf.mxu0
        %v457 = vadd.f32 0.0, %v456
        %v458 = vpop.f32.mrf.mxu0
        %459 = vmatprep.mubr.bf16.mxu0 0
        %460 = vmatmul.mubr.bf16.gmra.mxu0 %v318
        %v461 = vpop.f32.mrf.mxu0
        %v462 = vadd.f32 0.0, %v461
        %v463 = vpop.f32.mrf.mxu0
        %v464 = vpop.f32.mrf.mxu0
        %v465 = vadd.f32 0.0, %v464
        %v466 = vpop.f32.mrf.mxu0
        %467 = vmatprep.mubr.bf16.mxu0 0
        %468 = vmatmul.mubr.bf16.gmra.mxu0 %v321
        %v469 = vpop.f32.mrf.mxu0
        %v470 = vadd.f32 0.0, %v469
        %v471 = vpop.f32.mrf.mxu0
        %v472 = vpop.f32.mrf.mxu0
        %v473 = vadd.f32 0.0, %v472
        %v474 = vpop.f32.mrf.mxu0
        %475 = vmatprep.mubr.bf16.mxu0 0
        %476 = vmatmul.mubr.bf16.gmra.mxu0 %v324
        %v477 = vpop.f32.mrf.mxu0
        %v478 = vadd.f32 0.0, %v477
        %v479 = vpop.f32.mrf.mxu0
        %v480 = vpop.f32.mrf.mxu0
        %v481 = vadd.f32 0.0, %v480
        %v482 = vpop.f32.mrf.mxu0
        %483 = vmatprep.mubr.bf16.mxu0 0
        %484 = vmatmul.mubr.bf16.gmra.mxu0 %v327
        %v485 = vpop.f32.mrf.mxu0
        %v486 = vadd.f32 0.0, %v485
        %v487 = vpop.f32.mrf.mxu0
        %v488 = vpop.f32.mrf.mxu0
        %v489 = vadd.f32 0.0, %v488
        %v490 = vpop.f32.mrf.mxu0
        %491 = vmatprep.mubr.bf16.mxu0 0
        %492 = vmatmul.mubr.bf16.gmra.mxu0 %v330
        %v493 = vpop.f32.mrf.mxu0
        %v494 = vadd.f32 0.0, %v493
        %v495 = vpop.f32.mrf.mxu0
        %v496 = vpop.f32.mrf.mxu0
        %v497 = vadd.f32 0.0, %v496
        %v498 = vpop.f32.mrf.mxu0
        %499 = vdwg.mxu0
        %v500 = vmax.f32 %v374, 0.0
        %v501 = vmax.f32 %v377, 0.0
        %v502 = vmax.f32 %v382, 0.0
        %v503 = vmax.f32 %v385, 0.0
        %v504 = vmax.f32 %v390, 0.0
        %v505 = vmax.f32 %v393, 0.0
        %v506 = vmax.f32 %v398, 0.0
        %v507 = vmax.f32 %v401, 0.0
        %v508 = vmax.f32 %v406, 0.0
        %v509 = vmax.f32 %v409, 0.0
        %v510 = vmax.f32 %v414, 0.0
        %v511 = vmax.f32 %v417, 0.0
        %v512 = vmax.f32 %v422, 0.0
        %v513 = vmax.f32 %v425, 0.0
        %v514 = vmax.f32 %v430, 0.0
        %v515 = vmax.f32 %v433, 0.0
        %v516 = vmax.f32 %v438, 0.0
        %v517 = vmax.f32 %v441, 0.0
        %v518 = vmax.f32 %v446, 0.0
        %v519 = vmax.f32 %v449, 0.0
        %v520 = vmax.f32 %v454, 0.0
        %v521 = vmax.f32 %v457, 0.0
        %v522 = vmax.f32 %v462, 0.0
        %v523 = vmax.f32 %v465, 0.0
        %v524 = vmax.f32 %v470, 0.0
        %v525 = vmax.f32 %v473, 0.0
        %v526 = vmax.f32 %v478, 0.0
        %v527 = vmax.f32 %v481, 0.0
        %v528 = vmax.f32 %v486, 0.0
        %v529 = vmax.f32 %v489, 0.0
        %v530 = vmax.f32 %v494, 0.0
        %v531 = vmax.f32 %v497, 0.0
        %v532 = vpack.c.bf16 %v501, %v500
        %v533 = vpack.c.bf16 %v503, %v502
        %v534 = vpack.c.bf16 %v505, %v504
        %v535 = vpack.c.bf16 %v507, %v506
        %v536 = vpack.c.bf16 %v509, %v508
        %v537 = vpack.c.bf16 %v511, %v510
        %v538 = vpack.c.bf16 %v513, %v512
        %v539 = vpack.c.bf16 %v515, %v514
        %v540 = vpack.c.bf16 %v517, %v516
        %v541 = vpack.c.bf16 %v519, %v518
        %v542 = vpack.c.bf16 %v521, %v520
        %v543 = vpack.c.bf16 %v523, %v522
        %v544 = vpack.c.bf16 %v525, %v524
        %v545 = vpack.c.bf16 %v527, %v526
        %v546 = vpack.c.bf16 %v529, %v528
        %v547 = vpack.c.bf16 %v531, %v530
        %v548 = vld [vmem:[%s2] sm:$0xf]
        %v549 = vld [vmem:[%s2 + $0x4] sm:$0xf]
        %v550 = vld [vmem:[%s2 + $0x8] sm:$0xf]
        %v551 = vld [vmem:[%s2 + $0xc] sm:$0xf]
        %v552 = vld [vmem:[%s2 + $0x10] sm:$0xf]
        %v553 = vld [vmem:[%s2 + $0x14] sm:$0xf]
        %v554 = vld [vmem:[%s2 + $0x18] sm:$0xf]
        %v555 = vld [vmem:[%s2 + $0x1c] sm:$0xf]
        %v564 = vunpack.c.l.b16 %v548
        %v565 = vunpack.c.l.b16 %v549
        %v566 = vunpack.c.l.b16 %v550
        %v567 = vunpack.c.l.b16 %v551
        %v568 = vunpack.c.l.b16 %v552
        %v569 = vunpack.c.l.b16 %v553
        %v570 = vunpack.c.l.b16 %v554
        %v571 = vunpack.c.l.b16 %v555
        %v572 = vpack.c.b16 %v565, %v564
        %v573 = vpack.c.b16 %v567, %v566
        %v574 = vpack.c.b16 %v569, %v568
        %v575 = vpack.c.b16 %v571, %v570
        %vm580 = vcmask 523264
        %v582 = vsel %vm580, %v532, 0
        %v585 = vsel %vm580, %v533, 0
        %v588 = vsel %vm580, %v534, 0
        %v591 = vsel %vm580, %v535, 0
        %v594 = vsel %vm580, %v536, 0
        %v597 = vsel %vm580, %v537, 0
        %v600 = vsel %vm580, %v538, 0
        %v603 = vsel %vm580, %v539, 0
        %v606 = vsel %vm580, %v540, 0
        %v609 = vsel %vm580, %v541, 0
        %v612 = vsel %vm580, %v542, 0
        %v615 = vsel %vm580, %v543, 0
        %v618 = vsel %vm580, %v544, 0
        %v621 = vsel %vm580, %v545, 0
        %v624 = vsel %vm580, %v546, 0
        %v627 = vsel %vm580, %v547, 0
        %629 = vmatprep.subr.bf16.mxu0 0
        %630 = vmatpush1.bf16.msra.mxu0 0
        %631 = vmatprep.subr.bf16.mxu0 0
        %632 = vmatpush1.bf16.msra.mxu0 0
        %633 = vmatprep.subr.bf16.mxu0 0
        %634 = vmatpush1.bf16.msra.mxu0 0
        %635 = vmatprep.subr.bf16.mxu0 0
        %636 = vmatpush1.bf16.msra.mxu0 0
        %637 = vmatprep.subr.bf16.mxu0 0
        %638 = vmatpush1.bf16.msra.mxu0 %v575
        %639 = vmatprep.subr.bf16.mxu0 0
        %640 = vmatpush1.bf16.msra.mxu0 %v574
        %641 = vmatprep.subr.bf16.mxu0 0
        %642 = vmatpush1.bf16.msra.mxu0 %v573
        %643 = vmatprep.subr.bf16.mxu0 0
        %644 = vmatpush1.bf16.msra.mxu0 %v572
        %645 = vmatprep.subr.bf16.mxu0 0
        %646 = vmatpush2.bf16.msra.mxu0 0
        %647 = vmatprep.subr.bf16.mxu0 0
        %648 = vmatpush2.bf16.msra.mxu0 0
        %649 = vmatprep.subr.bf16.mxu0 0
        %650 = vmatpush2.bf16.msra.mxu0 0
        %651 = vmatprep.subr.bf16.mxu0 0
        %652 = vmatpush2.bf16.msra.mxu0 0
        %653 = vmatprep.subr.bf16.mxu0 0
        %654 = vmatpush2.bf16.msra.mxu0 0
        %655 = vmatprep.subr.bf16.mxu0 0
        %656 = vmatpush2.bf16.msra.mxu0 0
        %657 = vmatprep.subr.bf16.mxu0 0
        %658 = vmatpush2.bf16.msra.mxu0 0
        %659 = vmatprep.subr.bf16.mxu0 0
        %660 = vmatpush2.bf16.msra.mxu0 0
        %661 = vmatprep.mubr.bf16.mxu0 0
        %662 = vmatmul.mubr.bf16.gmra.mxu0 %v582
        %v663 = vpop.f32.mrf.mxu0
        %v664 = vadd.f32 0.0, %v663
        %v665 = vpop.f32.mrf.mxu0
        %v666 = vpop.f32.mrf.mxu0
        %v667 = vadd.f32 0.0, %v666
        %v668 = vpop.f32.mrf.mxu0
        %669 = vmatprep.mubr.bf16.mxu0 0
        %670 = vmatmul.mubr.bf16.gmra.mxu0 %v585
        %v671 = vpop.f32.mrf.mxu0
        %v672 = vadd.f32 0.0, %v671
        %v673 = vpop.f32.mrf.mxu0
        %v674 = vpop.f32.mrf.mxu0
        %v675 = vadd.f32 0.0, %v674
        %v676 = vpop.f32.mrf.mxu0
        %677 = vmatprep.mubr.bf16.mxu0 0
        %678 = vmatmul.mubr.bf16.gmra.mxu0 %v588
        %v679 = vpop.f32.mrf.mxu0
        %v680 = vadd.f32 0.0, %v679
        %v681 = vpop.f32.mrf.mxu0
        %v682 = vpop.f32.mrf.mxu0
        %v683 = vadd.f32 0.0, %v682
        %v684 = vpop.f32.mrf.mxu0
        %685 = vmatprep.mubr.bf16.mxu0 0
        %686 = vmatmul.mubr.bf16.gmra.mxu0 %v591
        %v687 = vpop.f32.mrf.mxu0
        %v688 = vadd.f32 0.0, %v687
        %v689 = vpop.f32.mrf.mxu0
        %v690 = vpop.f32.mrf.mxu0
        %v691 = vadd.f32 0.0, %v690
        %v692 = vpop.f32.mrf.mxu0
        %693 = vmatprep.mubr.bf16.mxu0 0
        %694 = vmatmul.mubr.bf16.gmra.mxu0 %v594
        %v695 = vpop.f32.mrf.mxu0
        %v696 = vadd.f32 0.0, %v695
        %v697 = vpop.f32.mrf.mxu0
        %v698 = vpop.f32.mrf.mxu0
        %v699 = vadd.f32 0.0, %v698
        %v700 = vpop.f32.mrf.mxu0
        %701 = vmatprep.mubr.bf16.mxu0 0
        %702 = vmatmul.mubr.bf16.gmra.mxu0 %v597
        %v703 = vpop.f32.mrf.mxu0
        %v704 = vadd.f32 0.0, %v703
        %v705 = vpop.f32.mrf.mxu0
        %v706 = vpop.f32.mrf.mxu0
        %v707 = vadd.f32 0.0, %v706
        %v708 = vpop.f32.mrf.mxu0
        %709 = vmatprep.mubr.bf16.mxu0 0
        %710 = vmatmul.mubr.bf16.gmra.mxu0 %v600
        %v711 = vpop.f32.mrf.mxu0
        %v712 = vadd.f32 0.0, %v711
        %v713 = vpop.f32.mrf.mxu0
        %v714 = vpop.f32.mrf.mxu0
        %v715 = vadd.f32 0.0, %v714
        %v716 = vpop.f32.mrf.mxu0
        %717 = vmatprep.mubr.bf16.mxu0 0
        %718 = vmatmul.mubr.bf16.gmra.mxu0 %v603
        %v719 = vpop.f32.mrf.mxu0
        %v720 = vadd.f32 0.0, %v719
        %v721 = vpop.f32.mrf.mxu0
        %v722 = vpop.f32.mrf.mxu0
        %v723 = vadd.f32 0.0, %v722
        %v724 = vpop.f32.mrf.mxu0
        %725 = vmatprep.mubr.bf16.mxu0 0
        %726 = vmatmul.mubr.bf16.gmra.mxu0 %v606
        %v727 = vpop.f32.mrf.mxu0
        %v728 = vadd.f32 0.0, %v727
        %v729 = vpop.f32.mrf.mxu0
        %v730 = vpop.f32.mrf.mxu0
        %v731 = vadd.f32 0.0, %v730
        %v732 = vpop.f32.mrf.mxu0
        %733 = vmatprep.mubr.bf16.mxu0 0
        %734 = vmatmul.mubr.bf16.gmra.mxu0 %v609
        %v735 = vpop.f32.mrf.mxu0
        %v736 = vadd.f32 0.0, %v735
        %v737 = vpop.f32.mrf.mxu0
        %v738 = vpop.f32.mrf.mxu0
        %v739 = vadd.f32 0.0, %v738
        %v740 = vpop.f32.mrf.mxu0
        %741 = vmatprep.mubr.bf16.mxu0 0
        %742 = vmatmul.mubr.bf16.gmra.mxu0 %v612
        %v743 = vpop.f32.mrf.mxu0
        %v744 = vadd.f32 0.0, %v743
        %v745 = vpop.f32.mrf.mxu0
        %v746 = vpop.f32.mrf.mxu0
        %v747 = vadd.f32 0.0, %v746
        %v748 = vpop.f32.mrf.mxu0
        %749 = vmatprep.mubr.bf16.mxu0 0
        %750 = vmatmul.mubr.bf16.gmra.mxu0 %v615
        %v751 = vpop.f32.mrf.mxu0
        %v752 = vadd.f32 0.0, %v751
        %v753 = vpop.f32.mrf.mxu0
        %v754 = vpop.f32.mrf.mxu0
        %v755 = vadd.f32 0.0, %v754
        %v756 = vpop.f32.mrf.mxu0
        %757 = vmatprep.mubr.bf16.mxu0 0
        %758 = vmatmul.mubr.bf16.gmra.mxu0 %v618
        %v759 = vpop.f32.mrf.mxu0
        %v760 = vadd.f32 0.0, %v759
        %v761 = vpop.f32.mrf.mxu0
        %v762 = vpop.f32.mrf.mxu0
        %v763 = vadd.f32 0.0, %v762
        %v764 = vpop.f32.mrf.mxu0
        %765 = vmatprep.mubr.bf16.mxu0 0
        %766 = vmatmul.mubr.bf16.gmra.mxu0 %v621
        %v767 = vpop.f32.mrf.mxu0
        %v768 = vadd.f32 0.0, %v767
        %v769 = vpop.f32.mrf.mxu0
        %v770 = vpop.f32.mrf.mxu0
        %v771 = vadd.f32 0.0, %v770
        %v772 = vpop.f32.mrf.mxu0
        %773 = vmatprep.mubr.bf16.mxu0 0
        %774 = vmatmul.mubr.bf16.gmra.mxu0 %v624
        %v775 = vpop.f32.mrf.mxu0
        %v776 = vadd.f32 0.0, %v775
        %v777 = vpop.f32.mrf.mxu0
        %v778 = vpop.f32.mrf.mxu0
        %v779 = vadd.f32 0.0, %v778
        %v780 = vpop.f32.mrf.mxu0
        %781 = vmatprep.mubr.bf16.mxu0 0
        %782 = vmatmul.mubr.bf16.gmra.mxu0 %v627
        %v783 = vpop.f32.mrf.mxu0
        %v784 = vadd.f32 0.0, %v783
        %v785 = vpop.f32.mrf.mxu0
        %v786 = vpop.f32.mrf.mxu0
        %v787 = vadd.f32 0.0, %v786
        %v788 = vpop.f32.mrf.mxu0
        %789 = vdwg.mxu0
        %v790 = vmax.f32 %v664, 0.0
        %v791 = vmax.f32 %v667, 0.0
        %v792 = vmax.f32 %v672, 0.0
        %v793 = vmax.f32 %v675, 0.0
        %v794 = vmax.f32 %v680, 0.0
        %v795 = vmax.f32 %v683, 0.0
        %v796 = vmax.f32 %v688, 0.0
        %v797 = vmax.f32 %v691, 0.0
        %v798 = vmax.f32 %v696, 0.0
        %v799 = vmax.f32 %v699, 0.0
        %v800 = vmax.f32 %v704, 0.0
        %v801 = vmax.f32 %v707, 0.0
        %v802 = vmax.f32 %v712, 0.0
        %v803 = vmax.f32 %v715, 0.0
        %v804 = vmax.f32 %v720, 0.0
        %v805 = vmax.f32 %v723, 0.0
        %v806 = vmax.f32 %v728, 0.0
        %v807 = vmax.f32 %v731, 0.0
        %v808 = vmax.f32 %v736, 0.0
        %v809 = vmax.f32 %v739, 0.0
        %v810 = vmax.f32 %v744, 0.0
        %v811 = vmax.f32 %v747, 0.0
        %v812 = vmax.f32 %v752, 0.0
        %v813 = vmax.f32 %v755, 0.0
        %v814 = vmax.f32 %v760, 0.0
        %v815 = vmax.f32 %v763, 0.0
        %v816 = vmax.f32 %v768, 0.0
        %v817 = vmax.f32 %v771, 0.0
        %v818 = vmax.f32 %v776, 0.0
        %v819 = vmax.f32 %v779, 0.0
        %v820 = vmax.f32 %v784, 0.0
        %v821 = vmax.f32 %v787, 0.0
        %v822 = vpack.c.bf16 %v791, %v790
        %v823 = vpack.c.bf16 %v793, %v792
        %v824 = vpack.c.bf16 %v795, %v794
        %v825 = vpack.c.bf16 %v797, %v796
        %v826 = vpack.c.bf16 %v799, %v798
        %v827 = vpack.c.bf16 %v801, %v800
        %v828 = vpack.c.bf16 %v803, %v802
        %v829 = vpack.c.bf16 %v805, %v804
        %v830 = vpack.c.bf16 %v807, %v806
        %v831 = vpack.c.bf16 %v809, %v808
        %v832 = vpack.c.bf16 %v811, %v810
        %v833 = vpack.c.bf16 %v813, %v812
        %v834 = vpack.c.bf16 %v815, %v814
        %v835 = vpack.c.bf16 %v817, %v816
        %v836 = vpack.c.bf16 %v819, %v818
        %v837 = vpack.c.bf16 %v821, %v820
        %v838 = vld [vmem:[%s3] sm:$0xf]
        %v839 = vld [vmem:[%s3 + $0x4] sm:$0xf]
        %v840 = vld [vmem:[%s3 + $0x8] sm:$0xf]
        %v841 = vld [vmem:[%s3 + $0xc] sm:$0xf]
        %v842 = vld [vmem:[%s3 + $0x10] sm:$0xf]
        %v843 = vld [vmem:[%s3 + $0x14] sm:$0xf]
        %v844 = vld [vmem:[%s3 + $0x18] sm:$0xf]
        %v845 = vld [vmem:[%s3 + $0x1c] sm:$0xf]
        %v854 = vunpack.c.l.b16 %v838
        %v855 = vunpack.c.l.b16 %v839
        %v856 = vunpack.c.l.b16 %v840
        %v857 = vunpack.c.l.b16 %v841
        %v858 = vunpack.c.l.b16 %v842
        %v859 = vunpack.c.l.b16 %v843
        %v860 = vunpack.c.l.b16 %v844
        %v861 = vunpack.c.l.b16 %v845
        %v862 = vpack.c.b16 %v855, %v854
        %v863 = vpack.c.b16 %v857, %v856
        %v864 = vpack.c.b16 %v859, %v858
        %v865 = vpack.c.b16 %v861, %v860
        %v871 = vsel %vm580, %v822, 0
        %v874 = vsel %vm580, %v823, 0
        %v877 = vsel %vm580, %v824, 0
        %v880 = vsel %vm580, %v825, 0
        %v883 = vsel %vm580, %v826, 0
        %v886 = vsel %vm580, %v827, 0
        %v889 = vsel %vm580, %v828, 0
        %v892 = vsel %vm580, %v829, 0
        %v895 = vsel %vm580, %v830, 0
        %v898 = vsel %vm580, %v831, 0
        %v901 = vsel %vm580, %v832, 0
        %v904 = vsel %vm580, %v833, 0
        %v907 = vsel %vm580, %v834, 0
        %v910 = vsel %vm580, %v835, 0
        %v913 = vsel %vm580, %v836, 0
        %v916 = vsel %vm580, %v837, 0
        %918 = vmatprep.subr.bf16.mxu0 0
        %919 = vmatpush1.bf16.msra.mxu0 0
        %920 = vmatprep.subr.bf16.mxu0 0
        %921 = vmatpush1.bf16.msra.mxu0 0
        %922 = vmatprep.subr.bf16.mxu0 0
        %923 = vmatpush1.bf16.msra.mxu0 0
        %924 = vmatprep.subr.bf16.mxu0 0
        %925 = vmatpush1.bf16.msra.mxu0 0
        %926 = vmatprep.subr.bf16.mxu0 0
        %927 = vmatpush1.bf16.msra.mxu0 %v865
        %928 = vmatprep.subr.bf16.mxu0 0
        %929 = vmatpush1.bf16.msra.mxu0 %v864
        %930 = vmatprep.subr.bf16.mxu0 0
        %931 = vmatpush1.bf16.msra.mxu0 %v863
        %932 = vmatprep.subr.bf16.mxu0 0
        %933 = vmatpush1.bf16.msra.mxu0 %v862
        %934 = vmatprep.subr.bf16.mxu0 0
        %935 = vmatpush2.bf16.msra.mxu0 0
        %936 = vmatprep.subr.bf16.mxu0 0
        %937 = vmatpush2.bf16.msra.mxu0 0
        %938 = vmatprep.subr.bf16.mxu0 0
        %939 = vmatpush2.bf16.msra.mxu0 0
        %940 = vmatprep.subr.bf16.mxu0 0
        %941 = vmatpush2.bf16.msra.mxu0 0
        %942 = vmatprep.subr.bf16.mxu0 0
        %943 = vmatpush2.bf16.msra.mxu0 0
        %944 = vmatprep.subr.bf16.mxu0 0
        %945 = vmatpush2.bf16.msra.mxu0 0
        %946 = vmatprep.subr.bf16.mxu0 0
        %947 = vmatpush2.bf16.msra.mxu0 0
        %948 = vmatprep.subr.bf16.mxu0 0
        %949 = vmatpush2.bf16.msra.mxu0 0
        %950 = vmatprep.mubr.bf16.mxu0 0
        %951 = vmatmul.mubr.bf16.gmra.mxu0 %v871
        %v952 = vpop.f32.mrf.mxu0
        %v953 = vadd.f32 0.0, %v952
        %v954 = vpop.f32.mrf.mxu0
        %v955 = vpop.f32.mrf.mxu0
        %v956 = vadd.f32 0.0, %v955
        %v957 = vpop.f32.mrf.mxu0
        %958 = vmatprep.mubr.bf16.mxu0 0
        %959 = vmatmul.mubr.bf16.gmra.mxu0 %v874
        %v960 = vpop.f32.mrf.mxu0
        %v961 = vadd.f32 0.0, %v960
        %v962 = vpop.f32.mrf.mxu0
        %v963 = vpop.f32.mrf.mxu0
        %v964 = vadd.f32 0.0, %v963
        %v965 = vpop.f32.mrf.mxu0
        %966 = vmatprep.mubr.bf16.mxu0 0
        %967 = vmatmul.mubr.bf16.gmra.mxu0 %v877
        %v968 = vpop.f32.mrf.mxu0
        %v969 = vadd.f32 0.0, %v968
        %v970 = vpop.f32.mrf.mxu0
        %v971 = vpop.f32.mrf.mxu0
        %v972 = vadd.f32 0.0, %v971
        %v973 = vpop.f32.mrf.mxu0
        %974 = vmatprep.mubr.bf16.mxu0 0
        %975 = vmatmul.mubr.bf16.gmra.mxu0 %v880
        %v976 = vpop.f32.mrf.mxu0
        %v977 = vadd.f32 0.0, %v976
        %v978 = vpop.f32.mrf.mxu0
        %v979 = vpop.f32.mrf.mxu0
        %v980 = vadd.f32 0.0, %v979
        %v981 = vpop.f32.mrf.mxu0
        %982 = vmatprep.mubr.bf16.mxu0 0
        %983 = vmatmul.mubr.bf16.gmra.mxu0 %v883
        %v984 = vpop.f32.mrf.mxu0
        %v985 = vadd.f32 0.0, %v984
        %v986 = vpop.f32.mrf.mxu0
        %v987 = vpop.f32.mrf.mxu0
        %v988 = vadd.f32 0.0, %v987
        %v989 = vpop.f32.mrf.mxu0
        %990 = vmatprep.mubr.bf16.mxu0 0
        %991 = vmatmul.mubr.bf16.gmra.mxu0 %v886
        %v992 = vpop.f32.mrf.mxu0
        %v993 = vadd.f32 0.0, %v992
        %v994 = vpop.f32.mrf.mxu0
        %v995 = vpop.f32.mrf.mxu0
        %v996 = vadd.f32 0.0, %v995
        %v997 = vpop.f32.mrf.mxu0
        %998 = vmatprep.mubr.bf16.mxu0 0
        %999 = vmatmul.mubr.bf16.gmra.mxu0 %v889
        %v1000 = vpop.f32.mrf.mxu0
        %v1001 = vadd.f32 0.0, %v1000
        %v1002 = vpop.f32.mrf.mxu0
        %v1003 = vpop.f32.mrf.mxu0
        %v1004 = vadd.f32 0.0, %v1003
        %v1005 = vpop.f32.mrf.mxu0
        %1006 = vmatprep.mubr.bf16.mxu0 0
        %1007 = vmatmul.mubr.bf16.gmra.mxu0 %v892
        %v1008 = vpop.f32.mrf.mxu0
        %v1009 = vadd.f32 0.0, %v1008
        %v1010 = vpop.f32.mrf.mxu0
        %v1011 = vpop.f32.mrf.mxu0
        %v1012 = vadd.f32 0.0, %v1011
        %v1013 = vpop.f32.mrf.mxu0
        %1014 = vmatprep.mubr.bf16.mxu0 0
        %1015 = vmatmul.mubr.bf16.gmra.mxu0 %v895
        %v1016 = vpop.f32.mrf.mxu0
        %v1017 = vadd.f32 0.0, %v1016
        %v1018 = vpop.f32.mrf.mxu0
        %v1019 = vpop.f32.mrf.mxu0
        %v1020 = vadd.f32 0.0, %v1019
        %v1021 = vpop.f32.mrf.mxu0
        %1022 = vmatprep.mubr.bf16.mxu0 0
        %1023 = vmatmul.mubr.bf16.gmra.mxu0 %v898
        %v1024 = vpop.f32.mrf.mxu0
        %v1025 = vadd.f32 0.0, %v1024
        %v1026 = vpop.f32.mrf.mxu0
        %v1027 = vpop.f32.mrf.mxu0
        %v1028 = vadd.f32 0.0, %v1027
        %v1029 = vpop.f32.mrf.mxu0
        %1030 = vmatprep.mubr.bf16.mxu0 0
        %1031 = vmatmul.mubr.bf16.gmra.mxu0 %v901
        %v1032 = vpop.f32.mrf.mxu0
        %v1033 = vadd.f32 0.0, %v1032
        %v1034 = vpop.f32.mrf.mxu0
        %v1035 = vpop.f32.mrf.mxu0
        %v1036 = vadd.f32 0.0, %v1035
        %v1037 = vpop.f32.mrf.mxu0
        %1038 = vmatprep.mubr.bf16.mxu0 0
        %1039 = vmatmul.mubr.bf16.gmra.mxu0 %v904
        %v1040 = vpop.f32.mrf.mxu0
        %v1041 = vadd.f32 0.0, %v1040
        %v1042 = vpop.f32.mrf.mxu0
        %v1043 = vpop.f32.mrf.mxu0
        %v1044 = vadd.f32 0.0, %v1043
        %v1045 = vpop.f32.mrf.mxu0
        %1046 = vmatprep.mubr.bf16.mxu0 0
        %1047 = vmatmul.mubr.bf16.gmra.mxu0 %v907
        %v1048 = vpop.f32.mrf.mxu0
        %v1049 = vadd.f32 0.0, %v1048
        %v1050 = vpop.f32.mrf.mxu0
        %v1051 = vpop.f32.mrf.mxu0
        %v1052 = vadd.f32 0.0, %v1051
        %v1053 = vpop.f32.mrf.mxu0
        %1054 = vmatprep.mubr.bf16.mxu0 0
        %1055 = vmatmul.mubr.bf16.gmra.mxu0 %v910
        %v1056 = vpop.f32.mrf.mxu0
        %v1057 = vadd.f32 0.0, %v1056
        %v1058 = vpop.f32.mrf.mxu0
        %v1059 = vpop.f32.mrf.mxu0
        %v1060 = vadd.f32 0.0, %v1059
        %v1061 = vpop.f32.mrf.mxu0
        %1062 = vmatprep.mubr.bf16.mxu0 0
        %1063 = vmatmul.mubr.bf16.gmra.mxu0 %v913
        %v1064 = vpop.f32.mrf.mxu0
        %v1065 = vadd.f32 0.0, %v1064
        %v1066 = vpop.f32.mrf.mxu0
        %v1067 = vpop.f32.mrf.mxu0
        %v1068 = vadd.f32 0.0, %v1067
        %v1069 = vpop.f32.mrf.mxu0
        %1070 = vmatprep.mubr.bf16.mxu0 0
        %1071 = vmatmul.mubr.bf16.gmra.mxu0 %v916
        %v1072 = vpop.f32.mrf.mxu0
        %v1073 = vadd.f32 0.0, %v1072
        %v1074 = vpop.f32.mrf.mxu0
        %v1075 = vpop.f32.mrf.mxu0
        %v1076 = vadd.f32 0.0, %v1075
        %v1077 = vpop.f32.mrf.mxu0
        %1078 = vdwg.mxu0
        %v1079 = vxor.u32 %v953, 2147483648
        %v1080 = vxor.u32 %v956, 2147483648
        %v1081 = vxor.u32 %v961, 2147483648
        %v1082 = vxor.u32 %v964, 2147483648
        %v1083 = vxor.u32 %v969, 2147483648
        %v1084 = vxor.u32 %v972, 2147483648
        %v1085 = vxor.u32 %v977, 2147483648
        %v1086 = vxor.u32 %v980, 2147483648
        %v1087 = vxor.u32 %v985, 2147483648
        %v1088 = vxor.u32 %v988, 2147483648
        %v1089 = vxor.u32 %v993, 2147483648
        %v1090 = vxor.u32 %v996, 2147483648
        %v1091 = vxor.u32 %v1001, 2147483648
        %v1092 = vxor.u32 %v1004, 2147483648
        %v1093 = vxor.u32 %v1009, 2147483648
        %v1094 = vxor.u32 %v1012, 2147483648
        %v1095 = vxor.u32 %v1017, 2147483648
        %v1096 = vxor.u32 %v1020, 2147483648
        %v1097 = vxor.u32 %v1025, 2147483648
        %v1098 = vxor.u32 %v1028, 2147483648
        %v1099 = vxor.u32 %v1033, 2147483648
        %v1100 = vxor.u32 %v1036, 2147483648
        %v1101 = vxor.u32 %v1041, 2147483648
        %v1102 = vxor.u32 %v1044, 2147483648
        %v1103 = vxor.u32 %v1049, 2147483648
        %v1104 = vxor.u32 %v1052, 2147483648
        %v1105 = vxor.u32 %v1057, 2147483648
        %v1106 = vxor.u32 %v1060, 2147483648
        %v1107 = vxor.u32 %v1065, 2147483648
        %v1108 = vxor.u32 %v1068, 2147483648
        %v1109 = vxor.u32 %v1073, 2147483648
        %v1110 = vxor.u32 %v1076, 2147483648
        %v1111 = vmul.f32 %v1079, 1.442695
        %v1112 = vpow.pop %v1111
        %v1113 = vmul.f32 %v1080, 1.442695
        %v1114 = vpow.pop %v1113
        %v1115 = vmul.f32 %v1081, 1.442695
        %v1116 = vpow.pop %v1115
        %v1117 = vmul.f32 %v1082, 1.442695
        %v1118 = vpow.pop %v1117
        %v1119 = vmul.f32 %v1083, 1.442695
        %v1120 = vpow.pop %v1119
        %v1121 = vmul.f32 %v1084, 1.442695
        %v1122 = vpow.pop %v1121
        %v1123 = vmul.f32 %v1085, 1.442695
        %v1124 = vpow.pop %v1123
        %v1125 = vmul.f32 %v1086, 1.442695
        %v1126 = vpow.pop %v1125
        %v1127 = vmul.f32 %v1087, 1.442695
        %v1128 = vpow.pop %v1127
        %v1129 = vmul.f32 %v1088, 1.442695
        %v1130 = vpow.pop %v1129
        %v1131 = vmul.f32 %v1089, 1.442695
        %v1132 = vpow.pop %v1131
        %v1133 = vmul.f32 %v1090, 1.442695
        %v1134 = vpow.pop %v1133
        %v1135 = vmul.f32 %v1091, 1.442695
        %v1136 = vpow.pop %v1135
        %v1137 = vmul.f32 %v1092, 1.442695
        %v1138 = vpow.pop %v1137
        %v1139 = vmul.f32 %v1093, 1.442695
        %v1140 = vpow.pop %v1139
        %v1141 = vmul.f32 %v1094, 1.442695
        %v1142 = vpow.pop %v1141
        %v1143 = vmul.f32 %v1095, 1.442695
        %v1144 = vpow.pop %v1143
        %v1145 = vmul.f32 %v1096, 1.442695
        %v1146 = vpow.pop %v1145
        %v1147 = vmul.f32 %v1097, 1.442695
        %v1148 = vpow.pop %v1147
        %v1149 = vmul.f32 %v1098, 1.442695
        %v1150 = vpow.pop %v1149
        %v1151 = vmul.f32 %v1099, 1.442695
        %v1152 = vpow.pop %v1151
        %v1153 = vmul.f32 %v1100, 1.442695
        %v1154 = vpow.pop %v1153
        %v1155 = vmul.f32 %v1101, 1.442695
        %v1156 = vpow.pop %v1155
        %v1157 = vmul.f32 %v1102, 1.442695
        %v1158 = vpow.pop %v1157
        %v1159 = vmul.f32 %v1103, 1.442695
        %v1160 = vpow.pop %v1159
        %v1161 = vmul.f32 %v1104, 1.442695
        %v1162 = vpow.pop %v1161
        %v1163 = vmul.f32 %v1105, 1.442695
        %v1164 = vpow.pop %v1163
        %v1165 = vmul.f32 %v1106, 1.442695
        %v1166 = vpow.pop %v1165
        %v1167 = vmul.f32 %v1107, 1.442695
        %v1168 = vpow.pop %v1167
        %v1169 = vmul.f32 %v1108, 1.442695
        %v1170 = vpow.pop %v1169
        %v1171 = vmul.f32 %v1109, 1.442695
        %v1172 = vpow.pop %v1171
        %v1173 = vmul.f32 %v1110, 1.442695
        %v1174 = vpow.pop %v1173
        %v1175 = vadd.f32 %v1112, 1.0
        %v1176 = vadd.f32 %v1114, 1.0
        %v1177 = vadd.f32 %v1116, 1.0
        %v1178 = vadd.f32 %v1118, 1.0
        %v1179 = vadd.f32 %v1120, 1.0
        %v1180 = vadd.f32 %v1122, 1.0
        %v1181 = vadd.f32 %v1124, 1.0
        %v1182 = vadd.f32 %v1126, 1.0
        %v1183 = vadd.f32 %v1128, 1.0
        %v1184 = vadd.f32 %v1130, 1.0
        %v1185 = vadd.f32 %v1132, 1.0
        %v1186 = vadd.f32 %v1134, 1.0
        %v1187 = vadd.f32 %v1136, 1.0
        %v1188 = vadd.f32 %v1138, 1.0
        %v1189 = vadd.f32 %v1140, 1.0
        %v1190 = vadd.f32 %v1142, 1.0
        %v1191 = vadd.f32 %v1144, 1.0
        %v1192 = vadd.f32 %v1146, 1.0
        %v1193 = vadd.f32 %v1148, 1.0
        %v1194 = vadd.f32 %v1150, 1.0
        %v1195 = vadd.f32 %v1152, 1.0
        %v1196 = vadd.f32 %v1154, 1.0
        %v1197 = vadd.f32 %v1156, 1.0
        %v1198 = vadd.f32 %v1158, 1.0
        %v1199 = vadd.f32 %v1160, 1.0
        %v1200 = vadd.f32 %v1162, 1.0
        %v1201 = vadd.f32 %v1164, 1.0
        %v1202 = vadd.f32 %v1166, 1.0
        %v1203 = vadd.f32 %v1168, 1.0
        %v1204 = vadd.f32 %v1170, 1.0
        %v1205 = vadd.f32 %v1172, 1.0
        %v1206 = vadd.f32 %v1174, 1.0
        %v1207 = vrcp.pop %v1175
        %v1208 = vmul.f32 1.0, %v1207
        %v1209 = vrcp.pop %v1176
        %v1210 = vmul.f32 1.0, %v1209
        %v1211 = vrcp.pop %v1177
        %v1212 = vmul.f32 1.0, %v1211
        %v1213 = vrcp.pop %v1178
        %v1214 = vmul.f32 1.0, %v1213
        %v1215 = vrcp.pop %v1179
        %v1216 = vmul.f32 1.0, %v1215
        %v1217 = vrcp.pop %v1180
        %v1218 = vmul.f32 1.0, %v1217
        %v1219 = vrcp.pop %v1181
        %v1220 = vmul.f32 1.0, %v1219
        %v1221 = vrcp.pop %v1182
        %v1222 = vmul.f32 1.0, %v1221
        %v1223 = vrcp.pop %v1183
        %v1224 = vmul.f32 1.0, %v1223
        %v1225 = vrcp.pop %v1184
        %v1226 = vmul.f32 1.0, %v1225
        %v1227 = vrcp.pop %v1185
        %v1228 = vmul.f32 1.0, %v1227
        %v1229 = vrcp.pop %v1186
        %v1230 = vmul.f32 1.0, %v1229
        %v1231 = vrcp.pop %v1187
        %v1232 = vmul.f32 1.0, %v1231
        %v1233 = vrcp.pop %v1188
        %v1234 = vmul.f32 1.0, %v1233
        %v1235 = vrcp.pop %v1189
        %v1236 = vmul.f32 1.0, %v1235
        %v1237 = vrcp.pop %v1190
        %v1238 = vmul.f32 1.0, %v1237
        %v1239 = vrcp.pop %v1191
        %v1240 = vmul.f32 1.0, %v1239
        %v1241 = vrcp.pop %v1192
        %v1242 = vmul.f32 1.0, %v1241
        %v1243 = vrcp.pop %v1193
        %v1244 = vmul.f32 1.0, %v1243
        %v1245 = vrcp.pop %v1194
        %v1246 = vmul.f32 1.0, %v1245
        %v1247 = vrcp.pop %v1195
        %v1248 = vmul.f32 1.0, %v1247
        %v1249 = vrcp.pop %v1196
        %v1250 = vmul.f32 1.0, %v1249
        %v1251 = vrcp.pop %v1197
        %v1252 = vmul.f32 1.0, %v1251
        %v1253 = vrcp.pop %v1198
        %v1254 = vmul.f32 1.0, %v1253
        %v1255 = vrcp.pop %v1199
        %v1256 = vmul.f32 1.0, %v1255
        %v1257 = vrcp.pop %v1200
        %v1258 = vmul.f32 1.0, %v1257
        %v1259 = vrcp.pop %v1201
        %v1260 = vmul.f32 1.0, %v1259
        %v1261 = vrcp.pop %v1202
        %v1262 = vmul.f32 1.0, %v1261
        %v1263 = vrcp.pop %v1203
        %v1264 = vmul.f32 1.0, %v1263
        %v1265 = vrcp.pop %v1204
        %v1266 = vmul.f32 1.0, %v1265
        %v1267 = vrcp.pop %v1205
        %v1268 = vmul.f32 1.0, %v1267
        %v1269 = vrcp.pop %v1206
        %v1270 = vmul.f32 1.0, %v1269
        %vm1271 = vcmask 23552
        %1272 = vst.msk [vmem:[%s199] sm:$0xff] %vm1271, %v1208
        %1273 = vst.msk [vmem:[%s199 + $0x8] sm:$0xff] %vm1271, %v1210
        %1274 = vst.msk [vmem:[%s199 + $0x10] sm:$0xff] %vm1271, %v1212
        %1275 = vst.msk [vmem:[%s199 + $0x18] sm:$0xff] %vm1271, %v1214
        %1276 = vst.msk [vmem:[%s199 + $0x20] sm:$0xff] %vm1271, %v1216
        %1277 = vst.msk [vmem:[%s199 + $0x28] sm:$0xff] %vm1271, %v1218
        %1278 = vst.msk [vmem:[%s199 + $0x30] sm:$0xff] %vm1271, %v1220
        %1279 = vst.msk [vmem:[%s199 + $0x38] sm:$0xff] %vm1271, %v1222
        %1280 = vst.msk [vmem:[%s199 + $0x40] sm:$0xff] %vm1271, %v1224
        %1281 = vst.msk [vmem:[%s199 + $0x48] sm:$0xff] %vm1271, %v1226
        %1282 = vst.msk [vmem:[%s199 + $0x50] sm:$0xff] %vm1271, %v1228
        %1283 = vst.msk [vmem:[%s199 + $0x58] sm:$0xff] %vm1271, %v1230
        %1284 = vst.msk [vmem:[%s199 + $0x60] sm:$0xff] %vm1271, %v1232
        %1285 = vst.msk [vmem:[%s199 + $0x68] sm:$0xff] %vm1271, %v1234
        %1286 = vst.msk [vmem:[%s199 + $0x70] sm:$0xff] %vm1271, %v1236
        %1287 = vst.msk [vmem:[%s199 + $0x78] sm:$0xff] %vm1271, %v1238
        %1288 = vst.msk [vmem:[%s199 + $0x80] sm:$0xff] %vm1271, %v1240
        %1289 = vst.msk [vmem:[%s199 + $0x88] sm:$0xff] %vm1271, %v1242
        %1290 = vst.msk [vmem:[%s199 + $0x90] sm:$0xff] %vm1271, %v1244
        %1291 = vst.msk [vmem:[%s199 + $0x98] sm:$0xff] %vm1271, %v1246
        %1292 = vst.msk [vmem:[%s199 + $0xa0] sm:$0xff] %vm1271, %v1248
        %1293 = vst.msk [vmem:[%s199 + $0xa8] sm:$0xff] %vm1271, %v1250
        %1294 = vst.msk [vmem:[%s199 + $0xb0] sm:$0xff] %vm1271, %v1252
        %1295 = vst.msk [vmem:[%s199 + $0xb8] sm:$0xff] %vm1271, %v1254
        %1296 = vst.msk [vmem:[%s199 + $0xc0] sm:$0xff] %vm1271, %v1256
        %1297 = vst.msk [vmem:[%s199 + $0xc8] sm:$0xff] %vm1271, %v1258
        %1298 = vst.msk [vmem:[%s199 + $0xd0] sm:$0xff] %vm1271, %v1260
        %1299 = vst.msk [vmem:[%s199 + $0xd8] sm:$0xff] %vm1271, %v1262
        %1300 = vst.msk [vmem:[%s199 + $0xe0] sm:$0xff] %vm1271, %v1264
        %1301 = vst.msk [vmem:[%s199 + $0xe8] sm:$0xff] %vm1271, %v1266
        %1302 = vst.msk [vmem:[%s199 + $0xf0] sm:$0xff] %vm1271, %v1268
        %1303 = vst.msk [vmem:[%s199 + $0xf8] sm:$0xff] %vm1271, %v1270
        %s1304 = sand.u32 %s112, 1
        %s1305 = sand.u32 %s112, 1
        %s1306 = smul.addr %s1305, 256
        %s1307 = scalar_lea.vmem [#allocation2], %s1306
        // Predicated region
        $region37: #{color_net_forward.1} parent=35 // pred_check
          %p1308 = pneg %p122
        $region38: #{color_net_forward.1} parent=35 // pred_check_branch
          %1310 = sbr.rel (%p1308) target = $region40
        $region39: #{color_net_forward.1} parent=35 // pred_region
          %s1311 = smul.u32 32, %s15
          %s1312 = ssub.s32 125, %s1311
          %p1313 = scmp.lt.s32.totalorder %s1312, 32
          %s1314 = scalar_select %p1313, %s1312, 32
          %s1315 = smul.u32 128, %s1314
          %p1316 = scmp.ne.s32.totalorder 0, %s1315
          %s1317 = smul.addr %s1311, 8
          %s1318 = scalar_lea.vmem %s4, %s1317
          // Predicated region
          $region41: #{color_net_forward.1} parent=39 // pred_check
            %p1319 = pneg %p1316
          $region42: #{color_net_forward.1} parent=39 // pred_check_branch
            %1321 = sbr.rel (%p1319) target = $region44
          $region43: #{color_net_forward.1} parent=39 // pred_region
            // Predicated region
            $region45: #{color_net_forward.1} parent=43 // pred_check
              _
            $region46: #{color_net_forward.1} parent=43 // pred_check_branch
              %1323 = sbr.rel (0) target = $region48
            $region47: #{color_net_forward.1} parent=43 // pred_region
              // Predicated region
              $region67: #{color_net_forward.1} parent=47 // pred_check
                _
              $region68: #{color_net_forward.1} parent=47 // pred_check_branch
                %1435 = sbr.rel (0) target = $region70
              $region69: #{color_net_forward.1} parent=47 // pred_region
                %s1436 = sshrl.u32 %s1314, 5
                // While loop
                $region71: #{color_net_forward.1} parent=69 // loop_pre_header
                  _
                $region72: #{color_net_forward.1} parent=69 // loop_header
                  %s1438 = sphi 0, %s1440
                  %p1439 = scmp.ge.s32.totalorder %s1438, %s1436
                  %s1443 = sphi 0, %s1512
                  %s1444 = sphi %s1307, %s1515
                  %s1445 = sphi %s1318, %s1516
                $region73: #{color_net_forward.1} parent=69 // loop_header_branch
                  %1442 = sbr.rel (%p1439) target = $region77
                $region74: #{color_net_forward.1} parent=69 // loop_body
                  %v1446 = vld [vmem:[%s1444] sm:$0xff]
                  %1447 = vst [vmem:[%s1445] sm:$0xff] %v1446
                  %v1448 = vld [vmem:[%s1444 + $0x8] sm:$0xff]
                  %1449 = vst [vmem:[%s1445 + $0x8] sm:$0xff] %v1448
                  %v1450 = vld [vmem:[%s1444 + $0x10] sm:$0xff]
                  %1451 = vst [vmem:[%s1445 + $0x10] sm:$0xff] %v1450
                  %v1452 = vld [vmem:[%s1444 + $0x18] sm:$0xff]
                  %1453 = vst [vmem:[%s1445 + $0x18] sm:$0xff] %v1452
                  %v1454 = vld [vmem:[%s1444 + $0x20] sm:$0xff]
                  %1455 = vst [vmem:[%s1445 + $0x20] sm:$0xff] %v1454
                  %v1456 = vld [vmem:[%s1444 + $0x28] sm:$0xff]
                  %1457 = vst [vmem:[%s1445 + $0x28] sm:$0xff] %v1456
                  %v1458 = vld [vmem:[%s1444 + $0x30] sm:$0xff]
                  %1459 = vst [vmem:[%s1445 + $0x30] sm:$0xff] %v1458
                  %v1460 = vld [vmem:[%s1444 + $0x38] sm:$0xff]
                  %1461 = vst [vmem:[%s1445 + $0x38] sm:$0xff] %v1460
                  %v1462 = vld [vmem:[%s1444 + $0x40] sm:$0xff]
                  %1463 = vst [vmem:[%s1445 + $0x40] sm:$0xff] %v1462
                  %v1464 = vld [vmem:[%s1444 + $0x48] sm:$0xff]
                  %1465 = vst [vmem:[%s1445 + $0x48] sm:$0xff] %v1464
                  %v1466 = vld [vmem:[%s1444 + $0x50] sm:$0xff]
                  %1467 = vst [vmem:[%s1445 + $0x50] sm:$0xff] %v1466
                  %v1468 = vld [vmem:[%s1444 + $0x58] sm:$0xff]
                  %1469 = vst [vmem:[%s1445 + $0x58] sm:$0xff] %v1468
                  %v1470 = vld [vmem:[%s1444 + $0x60] sm:$0xff]
                  %1471 = vst [vmem:[%s1445 + $0x60] sm:$0xff] %v1470
                  %v1472 = vld [vmem:[%s1444 + $0x68] sm:$0xff]
                  %1473 = vst [vmem:[%s1445 + $0x68] sm:$0xff] %v1472
                  %v1474 = vld [vmem:[%s1444 + $0x70] sm:$0xff]
                  %1475 = vst [vmem:[%s1445 + $0x70] sm:$0xff] %v1474
                  %v1476 = vld [vmem:[%s1444 + $0x78] sm:$0xff]
                  %1477 = vst [vmem:[%s1445 + $0x78] sm:$0xff] %v1476
                  %v1478 = vld [vmem:[%s1444 + $0x80] sm:$0xff]
                  %1479 = vst [vmem:[%s1445 + $0x80] sm:$0xff] %v1478
                  %v1480 = vld [vmem:[%s1444 + $0x88] sm:$0xff]
                  %1481 = vst [vmem:[%s1445 + $0x88] sm:$0xff] %v1480
                  %v1482 = vld [vmem:[%s1444 + $0x90] sm:$0xff]
                  %1483 = vst [vmem:[%s1445 + $0x90] sm:$0xff] %v1482
                  %v1484 = vld [vmem:[%s1444 + $0x98] sm:$0xff]
                  %1485 = vst [vmem:[%s1445 + $0x98] sm:$0xff] %v1484
                  %v1486 = vld [vmem:[%s1444 + $0xa0] sm:$0xff]
                  %1487 = vst [vmem:[%s1445 + $0xa0] sm:$0xff] %v1486
                  %v1488 = vld [vmem:[%s1444 + $0xa8] sm:$0xff]
                  %1489 = vst [vmem:[%s1445 + $0xa8] sm:$0xff] %v1488
                  %v1490 = vld [vmem:[%s1444 + $0xb0] sm:$0xff]
                  %1491 = vst [vmem:[%s1445 + $0xb0] sm:$0xff] %v1490
                  %v1492 = vld [vmem:[%s1444 + $0xb8] sm:$0xff]
                  %1493 = vst [vmem:[%s1445 + $0xb8] sm:$0xff] %v1492
                  %v1494 = vld [vmem:[%s1444 + $0xc0] sm:$0xff]
                  %1495 = vst [vmem:[%s1445 + $0xc0] sm:$0xff] %v1494
                  %v1496 = vld [vmem:[%s1444 + $0xc8] sm:$0xff]
                  %1497 = vst [vmem:[%s1445 + $0xc8] sm:$0xff] %v1496
                  %v1498 = vld [vmem:[%s1444 + $0xd0] sm:$0xff]
                  %1499 = vst [vmem:[%s1445 + $0xd0] sm:$0xff] %v1498
                  %v1500 = vld [vmem:[%s1444 + $0xd8] sm:$0xff]
                  %1501 = vst [vmem:[%s1445 + $0xd8] sm:$0xff] %v1500
                  %v1502 = vld [vmem:[%s1444 + $0xe0] sm:$0xff]
                  %1503 = vst [vmem:[%s1445 + $0xe0] sm:$0xff] %v1502
                  %v1504 = vld [vmem:[%s1444 + $0xe8] sm:$0xff]
                  %1505 = vst [vmem:[%s1445 + $0xe8] sm:$0xff] %v1504
                  %v1506 = vld [vmem:[%s1444 + $0xf0] sm:$0xff]
                  %1507 = vst [vmem:[%s1445 + $0xf0] sm:$0xff] %v1506
                  %v1508 = vld [vmem:[%s1444 + $0xf8] sm:$0xff]
                  %1509 = vst [vmem:[%s1445 + $0xf8] sm:$0xff] %v1508
                  %s1510 = sadd.s32 1, %s1443
                  %p1511 = scmp.ge.s32.totalorder %s1510, %s1436
                  %s1512 = scalar_select %p1511, 0, %s1510
                  %s1513 = smul.u32 %s1512, 256
                  %s1514 = smul.u32 %s1512, 256
                  %s1515 = scalar_lea.vmem %s1307, %s1513 [#allocation2]
                  %s1516 = scalar_lea.vmem %s1318, %s1514
                $region75: #{color_net_forward.1} parent=69 // loop_footer
                  %s1440 = sadd.s32 %s1438, 1
                $region76: #{color_net_forward.1} parent=69 // loop_footer_branch
                  %1437 = sbr.rel target = $region72
                $region77: #{color_net_forward.1} parent=69 // loop_exit
                  _
                %s1517 = sshrl.u32 %s1314, 5
                %s1518 = sand.u32 %s1314, 31
                %s1519 = smul.u32 %s1517, 32
                %s1520 = smul.u32 8, %s1519
                %s1521 = scalar_lea.vmem %s1307, %s1520 [#allocation2]
                %s1522 = smul.u32 8, %s1519
                %s1523 = scalar_lea.vmem %s1318, %s1522
                // While loop
                $region78: #{color_net_forward.1} parent=69 // loop_pre_header
                  _
                $region79: #{color_net_forward.1} parent=69 // loop_header
                  %s1525 = sphi 0, %s1527
                  %p1526 = scmp.ge.s32.totalorder %s1525, %s1518
                  %s1530 = sphi 0, %s1537
                  %s1531 = sphi %s1521, %s1540
                  %s1532 = sphi %s1523, %s1541
                $region80: #{color_net_forward.1} parent=69 // loop_header_branch
                  %1529 = sbr.rel (%p1526) target = $region84
                $region81: #{color_net_forward.1} parent=69 // loop_body
                  %v1533 = vld [vmem:[%s1531] sm:$0xff]
                  %1534 = vst [vmem:[%s1532] sm:$0xff] %v1533
                  %s1535 = sadd.s32 1, %s1530
                  %p1536 = scmp.ge.s32.totalorder %s1535, %s1518
                  %s1537 = scalar_select %p1536, 0, %s1535
                  %s1538 = smul.u32 %s1537, 8
                  %s1539 = smul.u32 %s1537, 8
                  %s1540 = scalar_lea.vmem %s1521, %s1538 [#allocation2]
                  %s1541 = scalar_lea.vmem %s1523, %s1539
                $region82: #{color_net_forward.1} parent=69 // loop_footer
                  %s1527 = sadd.s32 %s1525, 1
                $region83: #{color_net_forward.1} parent=69 // loop_footer_branch
                  %1524 = sbr.rel target = $region79
                $region84: #{color_net_forward.1} parent=69 // loop_exit
                  _
              $region70: #{color_net_forward.1} parent=47 // pred_fallthru
                _
              // Predicated region
              $region85: #{color_net_forward.1} parent=47 // pred_check
                _
              $region86: #{color_net_forward.1} parent=47 // pred_check_branch
                %1543 = sbr.rel target = $region88
              $region87: #{color_net_forward.1} parent=47 // pred_region
                _
              $region88: #{color_net_forward.1} parent=47 // pred_fallthru
                _
            $region48: #{color_net_forward.1} parent=43 // pred_fallthru
              _
            // Predicated region
            $region49: #{color_net_forward.1} parent=43 // pred_check
              _
            $region50: #{color_net_forward.1} parent=43 // pred_check_branch
              %1325 = sbr.rel target = $region52
            $region51: #{color_net_forward.1} parent=43 // pred_region
              %s1327 = ssub.s32 256, 1
              %s1328 = sshrl.u32 %s1314, 5
              // While loop
              $region53: #{color_net_forward.1} parent=51 // loop_pre_header
                _
              $region54: #{color_net_forward.1} parent=51 // loop_header
                %s1330 = sphi 0, %s1332
                %p1331 = scmp.ge.s32.totalorder %s1330, %s1328
                %s1335 = sphi 0, %s1404
                %s1336 = sphi %s1307, %s1407
                %s1337 = sphi %s1318, %s1408
              $region55: #{color_net_forward.1} parent=51 // loop_header_branch
                %1334 = sbr.rel (%p1331) target = $region59
              $region56: #{color_net_forward.1} parent=51 // loop_body
                %v1338 = vld [vmem:[%s1336] sm:%s1327]
                %1339 = vst [vmem:[%s1337] sm:%s1327] %v1338
                %v1340 = vld [vmem:[%s1336 + $0x8] sm:%s1327]
                %1341 = vst [vmem:[%s1337 + $0x8] sm:%s1327] %v1340
                %v1342 = vld [vmem:[%s1336 + $0x10] sm:%s1327]
                %1343 = vst [vmem:[%s1337 + $0x10] sm:%s1327] %v1342
                %v1344 = vld [vmem:[%s1336 + $0x18] sm:%s1327]
                %1345 = vst [vmem:[%s1337 + $0x18] sm:%s1327] %v1344
                %v1346 = vld [vmem:[%s1336 + $0x20] sm:%s1327]
                %1347 = vst [vmem:[%s1337 + $0x20] sm:%s1327] %v1346
                %v1348 = vld [vmem:[%s1336 + $0x28] sm:%s1327]
                %1349 = vst [vmem:[%s1337 + $0x28] sm:%s1327] %v1348
                %v1350 = vld [vmem:[%s1336 + $0x30] sm:%s1327]
                %1351 = vst [vmem:[%s1337 + $0x30] sm:%s1327] %v1350
                %v1352 = vld [vmem:[%s1336 + $0x38] sm:%s1327]
                %1353 = vst [vmem:[%s1337 + $0x38] sm:%s1327] %v1352
                %v1354 = vld [vmem:[%s1336 + $0x40] sm:%s1327]
                %1355 = vst [vmem:[%s1337 + $0x40] sm:%s1327] %v1354
                %v1356 = vld [vmem:[%s1336 + $0x48] sm:%s1327]
                %1357 = vst [vmem:[%s1337 + $0x48] sm:%s1327] %v1356
                %v1358 = vld [vmem:[%s1336 + $0x50] sm:%s1327]
                %1359 = vst [vmem:[%s1337 + $0x50] sm:%s1327] %v1358
                %v1360 = vld [vmem:[%s1336 + $0x58] sm:%s1327]
                %1361 = vst [vmem:[%s1337 + $0x58] sm:%s1327] %v1360
                %v1362 = vld [vmem:[%s1336 + $0x60] sm:%s1327]
                %1363 = vst [vmem:[%s1337 + $0x60] sm:%s1327] %v1362
                %v1364 = vld [vmem:[%s1336 + $0x68] sm:%s1327]
                %1365 = vst [vmem:[%s1337 + $0x68] sm:%s1327] %v1364
                %v1366 = vld [vmem:[%s1336 + $0x70] sm:%s1327]
                %1367 = vst [vmem:[%s1337 + $0x70] sm:%s1327] %v1366
                %v1368 = vld [vmem:[%s1336 + $0x78] sm:%s1327]
                %1369 = vst [vmem:[%s1337 + $0x78] sm:%s1327] %v1368
                %v1370 = vld [vmem:[%s1336 + $0x80] sm:%s1327]
                %1371 = vst [vmem:[%s1337 + $0x80] sm:%s1327] %v1370
                %v1372 = vld [vmem:[%s1336 + $0x88] sm:%s1327]
                %1373 = vst [vmem:[%s1337 + $0x88] sm:%s1327] %v1372
                %v1374 = vld [vmem:[%s1336 + $0x90] sm:%s1327]
                %1375 = vst [vmem:[%s1337 + $0x90] sm:%s1327] %v1374
                %v1376 = vld [vmem:[%s1336 + $0x98] sm:%s1327]
                %1377 = vst [vmem:[%s1337 + $0x98] sm:%s1327] %v1376
                %v1378 = vld [vmem:[%s1336 + $0xa0] sm:%s1327]
                %1379 = vst [vmem:[%s1337 + $0xa0] sm:%s1327] %v1378
                %v1380 = vld [vmem:[%s1336 + $0xa8] sm:%s1327]
                %1381 = vst [vmem:[%s1337 + $0xa8] sm:%s1327] %v1380
                %v1382 = vld [vmem:[%s1336 + $0xb0] sm:%s1327]
                %1383 = vst [vmem:[%s1337 + $0xb0] sm:%s1327] %v1382
                %v1384 = vld [vmem:[%s1336 + $0xb8] sm:%s1327]
                %1385 = vst [vmem:[%s1337 + $0xb8] sm:%s1327] %v1384
                %v1386 = vld [vmem:[%s1336 + $0xc0] sm:%s1327]
                %1387 = vst [vmem:[%s1337 + $0xc0] sm:%s1327] %v1386
                %v1388 = vld [vmem:[%s1336 + $0xc8] sm:%s1327]
                %1389 = vst [vmem:[%s1337 + $0xc8] sm:%s1327] %v1388
                %v1390 = vld [vmem:[%s1336 + $0xd0] sm:%s1327]
                %1391 = vst [vmem:[%s1337 + $0xd0] sm:%s1327] %v1390
                %v1392 = vld [vmem:[%s1336 + $0xd8] sm:%s1327]
                %1393 = vst [vmem:[%s1337 + $0xd8] sm:%s1327] %v1392
                %v1394 = vld [vmem:[%s1336 + $0xe0] sm:%s1327]
                %1395 = vst [vmem:[%s1337 + $0xe0] sm:%s1327] %v1394
                %v1396 = vld [vmem:[%s1336 + $0xe8] sm:%s1327]
                %1397 = vst [vmem:[%s1337 + $0xe8] sm:%s1327] %v1396
                %v1398 = vld [vmem:[%s1336 + $0xf0] sm:%s1327]
                %1399 = vst [vmem:[%s1337 + $0xf0] sm:%s1327] %v1398
                %v1400 = vld [vmem:[%s1336 + $0xf8] sm:%s1327]
                %1401 = vst [vmem:[%s1337 + $0xf8] sm:%s1327] %v1400
                %s1402 = sadd.s32 1, %s1335
                %p1403 = scmp.ge.s32.totalorder %s1402, %s1328
                %s1404 = scalar_select %p1403, 0, %s1402
                %s1405 = smul.u32 %s1404, 256
                %s1406 = smul.u32 %s1404, 256
                %s1407 = scalar_lea.vmem %s1307, %s1405 [#allocation2]
                %s1408 = scalar_lea.vmem %s1318, %s1406
              $region57: #{color_net_forward.1} parent=51 // loop_footer
                %s1332 = sadd.s32 %s1330, 1
              $region58: #{color_net_forward.1} parent=51 // loop_footer_branch
                %1329 = sbr.rel target = $region54
              $region59: #{color_net_forward.1} parent=51 // loop_exit
                _
              %s1409 = sshrl.u32 %s1314, 5
              %s1410 = sand.u32 %s1314, 31
              %s1411 = smul.u32 %s1409, 32
              %s1412 = smul.u32 8, %s1411
              %s1413 = scalar_lea.vmem %s1307, %s1412 [#allocation2]
              %s1414 = smul.u32 8, %s1411
              %s1415 = scalar_lea.vmem %s1318, %s1414
              // While loop
              $region60: #{color_net_forward.1} parent=51 // loop_pre_header
                _
              $region61: #{color_net_forward.1} parent=51 // loop_header
                %s1417 = sphi 0, %s1419
                %p1418 = scmp.ge.s32.totalorder %s1417, %s1410
                %s1422 = sphi 0, %s1429
                %s1423 = sphi %s1413, %s1432
                %s1424 = sphi %s1415, %s1433
              $region62: #{color_net_forward.1} parent=51 // loop_header_branch
                %1421 = sbr.rel (%p1418) target = $region66
              $region63: #{color_net_forward.1} parent=51 // loop_body
                %v1425 = vld [vmem:[%s1423] sm:%s1327]
                %1426 = vst [vmem:[%s1424] sm:%s1327] %v1425
                %s1427 = sadd.s32 1, %s1422
                %p1428 = scmp.ge.s32.totalorder %s1427, %s1410
                %s1429 = scalar_select %p1428, 0, %s1427
                %s1430 = smul.u32 %s1429, 8
                %s1431 = smul.u32 %s1429, 8
                %s1432 = scalar_lea.vmem %s1413, %s1430 [#allocation2]
                %s1433 = scalar_lea.vmem %s1415, %s1431
              $region64: #{color_net_forward.1} parent=51 // loop_footer
                %s1419 = sadd.s32 %s1417, 1
              $region65: #{color_net_forward.1} parent=51 // loop_footer_branch
                %1416 = sbr.rel target = $region61
              $region66: #{color_net_forward.1} parent=51 // loop_exit
                _
            $region52: #{color_net_forward.1} parent=43 // pred_fallthru
              _
          $region44: #{color_net_forward.1} parent=39 // pred_fallthru
            _
          %1544 = vnop
        $region40: #{color_net_forward.1} parent=35 // pred_fallthru
          _
      $region36: #{color_net_forward.1} parent=5 // pred_fallthru
        _
      %p1545 = scmp.le.s32.totalorder 2, %s10
      // Predicated region
      $region89: #{color_net_forward.1} parent=5 // pred_check
        %p1546 = pneg %p1545
      $region90: #{color_net_forward.1} parent=5 // pred_check_branch
        %1548 = sbr.rel (%p1546) target = $region92
      $region91: #{color_net_forward.1} parent=5 // pred_region
        %s1549 = ssub.s32 %s10, 2
        // Predicated region
        $region93: #{color_net_forward.1} parent=91 // pred_check
          %p1550 = pneg %p128
        $region94: #{color_net_forward.1} parent=91 // pred_check_branch
          %1552 = sbr.rel (%p1550) target = $region96
        $region95: #{color_net_forward.1} parent=91 // pred_region
          %s1553 = sand.u32 %s113, 1
          %s1554 = sand.u32 %s113, 1
          %s1555 = smul.addr %s1554, 256
          %s1556 = scalar_lea.vmem [#allocation2], %s1555
        $region96: #{color_net_forward.1} parent=91 // pred_fallthru
          _
      $region92: #{color_net_forward.1} parent=5 // pred_fallthru
        _
    $region6: #{color_net_forward.1} parent=1 // loop_footer
      %s14 = sadd.s32 1, %s10
    $region7: #{color_net_forward.1} parent=1 // loop_footer_branch
      %9 = sbr.rel target = $region3
    $region8: #{color_net_forward.1} parent=1 // loop_exit
      _

</llo_original>
